<compile_context>
chip_gen: v5e
topology: v5e:2x2
jax: 0.10.0
libtpu: 0.0.40
codegen_flags: <defaults>
</compile_context>

<pallas_src>
import functools

import jax
import jax.numpy as jnp
from jax import lax
from jax.experimental import pallas as pl
from jax.experimental.pallas import tpu as pltpu

_LANE = 128


def _round_up(x, m):
    return (x + m - 1) // m * m


def _stab(ak, e):
    # LRP-epsilon stabilizer: z = aK + e*sign(aK), sign(0) treated as +1.
    return jnp.where(ak >= 0, jnp.float32(e), jnp.float32(-e))


def _fuse_scale(gamma, var, eps):
    return gamma / jnp.sqrt(var + eps)


def _vmem_limit_bytes():
    # v7x: 64 MiB VMEM / TensorCore, v5e/v6e: 128 MiB.  Take ~2/3 of physical (leave
    # headroom for Mosaic internal scratch), clamp to [32, 96] MiB.
    try:
        cap = pltpu.get_tpu_info().vmem_capacity_bytes
    except Exception:
        cap = 64 * 1024 * 1024
    return int(min(max(cap * 2 // 3, 32 * 1024 * 1024), 96 * 1024 * 1024))


def _lrp_dense_kernel(rk_ref, ak_ref, w2_ref, aj2_ref, akn_ref, w1_ref, aj1_ref,
                      out_ref, *, e, H, W):
    """Fused LRP-eps: MultiLayerConvBNReLU (conv2 + downstream BNs) + conv1/norm2 step.

    One grid step = one (batch, class-tile) pair; NC_t classes stacked along M.
      rk_ref : (1, NC_t, H+2, W+2, Kcp) f32   class relevance (branches concat along Kcp)
      ak_ref : (1, H+2, W+2, Kcp)       bf16  downstream BN outputs (no class dim)
      w2_ref : (9*Kcp, Cbp)             bf16  fused+flipped conv2 weights, rows (dy,dx,k)
      aj2_ref: (1, H, W, Cbp)           bf16  relu2 output (conv2 input)
      akn_ref: (1, H, W, Cbp)           bf16  norm2 output
      w1_ref : (Cbp, Cinp)              bf16  conv1 weight fused with norm2
      aj1_ref: (1, H, W, Cinp)          bf16  relu1 output (conv1 input)
      out_ref: (1, NC_t, H, W, Cinp)    f32
    """
    f32, bf16 = jnp.float32, jnp.bfloat16
    nc_t = rk_ref.shape[1]
    kcp = rk_ref.shape[-1]
    cbp = w2_ref.shape[-1]
    M = nc_t * H * W

    rk = rk_ref[0]                                     # (nc_t, Hp, Wp, Kcp) f32
    ak = ak_ref[0].astype(f32)                         # (Hp, Wp, Kcp)
    # epsilon rule; padded border/channels have ak=rk=0 -> s=0 (correct zero padding).
    inv = pl.reciprocal(ak + _stab(ak, e), approx=True)
    s = rk * inv                                       # (nc_t, Hp, Wp, Kcp)

    # transposed 3x3 conv (stride 1, pad 1) over ALL downstream-BN branches:
    # 9 accumulated MXU dots (one per tap) -- no 9x im2col temporary in VMEM.
    c2 = jnp.zeros((M, cbp), f32)
    for dy in range(3):
        for dx in range(3):
            idx = 3 * dy + dx
            lhs = s[:, dy:dy + H, dx:dx + W, :].reshape(M, kcp).astype(bf16)
            rhs = w2_ref[idx * kcp:(idx + 1) * kcp, :]                  # (Kcp, Cbp)
            c2 = c2 + jnp.dot(lhs, rhs, preferred_element_type=f32)

    # LRP through conv2 + downstream BNs: r2 = relu2-out * c
    aj2 = aj2_ref[0].astype(f32).reshape(1, H * W, cbp)
    r2 = c2.reshape(nc_t, H * W, cbp) * aj2

    # fused L1: 1x1 conv1 + norm2 epsilon rule (no HBM round-trip of r2)
    akn = akn_ref[0].astype(f32).reshape(1, H * W, cbp)
    s1 = r2 * pl.reciprocal(akn + _stab(akn, e), approx=True)
    c1 = jnp.dot(s1.reshape(M, cbp).astype(bf16), w1_ref[...],
                 preferred_element_type=f32)                            # (M, Cinp)
    aj1 = aj1_ref[0].astype(f32).reshape(1, H * W, -1)
    out = c1.reshape(nc_t, H * W, -1) * aj1
    out_ref[...] = out.reshape(out_ref.shape).astype(out_ref.dtype)


# ----------------------------- JAX glue (layout / BN fusion) -----------------------------

def lrp_dense_layer(rK_list, aK_list, aJ2, aK_norm2, aJ1,
                    conv2_w, conv1_w, bn_list, norm2, e, Ch0, Ch1, nc_tile=None):
    """Pallas implementation of the ISNet dense-layer LRP block.

    rK_list[i]: (B, NC, C_i, H, W)  downstream relevances
    aK_list[i]: (B, C_i, H, W)      downstream BN outputs
    aJ2       : (B, Cb, H, W)       relu2 output (conv2 input)
    aK_norm2  : (B, Cb, H, W)       norm2 output
    aJ1       : (B, Cin, H, W)      relu1 output (conv1 input)
    conv2_w   : (G, Cb, 3, 3)   conv1_w: (Cb, Cin, 1, 1)   (no bias, DenseNet convs)
    bn_list[i]/norm2: dicts with gamma, beta, mean, var, eps
    returns   : (B, NC, Cin, H, W)
    """
    B, NC = rK_list[0].shape[:2]
    H, W = aJ2.shape[-2:]
    G = Ch1 - Ch0
    Cb = conv2_w.shape[1]
    Cin = conv1_w.shape[1]
    n_bn = len(rK_list)
    Kc = n_bn * G
    Hp, Wp = H + 2, W + 2
    f32, bf16 = jnp.float32, jnp.bfloat16

    # lane-dense channel padding (padded channels / weights are 0 -> contribute exactly 0)
    Kcp = _round_up(Kc, _LANE)
    Cbp = _round_up(Cb, _LANE)
    Cinp = _round_up(Cin, _LANE)

    if nc_tile is None:
        nc_tile = NC          # class tile: stack NC_t classes along the matmul M dim
    assert NC % nc_tile == 0

    rk_parts, ak_parts, w_parts = [], [], []
    for i in range(n_bn):
        rk = rK_list[i][:, :, Ch0:Ch1].astype(f32)                 # (B,NC,G,H,W)
        rk_parts.append(jnp.transpose(rk, (0, 1, 3, 4, 2)))        # (B,NC,H,W,G)
        ak = aK_list[i][:, Ch0:Ch1].astype(f32)                    # (B,G,H,W)
        ak_parts.append(jnp.transpose(ak, (0, 2, 3, 1)))           # (B,H,W,G)  (no class bcast)
        scale = _fuse_scale(bn_list[i]['gamma'][Ch0:Ch1],
                            bn_list[i]['var'][Ch0:Ch1], bn_list[i]['eps'])
        wf = conv2_w.astype(f32) * scale[:, None, None, None]      # fused (G,Cb,3,3)
        w_parts.append(jnp.transpose(jnp.flip(wf, (2, 3)), (2, 3, 0, 1)))  # (3,3,G,Cb) backward

    rk_cat = jnp.concatenate(rk_parts, axis=-1)                    # (B,NC,H,W,Kc)
    ak_cat = jnp.concatenate(ak_parts, axis=-1)                    # (B,H,W,Kc)
    # spatial +1 halo (border sees 0/(0+e)=0) and channel pad to Kcp
    rk_pad = jnp.pad(rk_cat, ((0, 0), (0, 0), (1, 1), (1, 1), (0, Kcp - Kc)))
    ak_pad = jnp.pad(ak_cat, ((0, 0), (1, 1), (1, 1), (0, Kcp - Kc))).astype(bf16)
    # TODO(synk): for further HBM savings, emit this channels-last concatenated layout
    # directly from the producer of rK/aK instead of transposing here.

    # big backward weight; row order = (dy, dx, branch, g) matches the in-kernel tap loop
    w_big = jnp.stack(w_parts, axis=2).reshape(9, Kc, Cb)
    w_big = jnp.pad(w_big, ((0, 0), (0, Kcp - Kc), (0, Cbp - Cb)))
    w_big = w_big.reshape(9 * Kcp, Cbp).astype(bf16)

    cpad = lambda x, c: jnp.pad(x, ((0, 0), (0, 0), (0, 0), (0, c)))
    aj2 = cpad(jnp.transpose(aJ2.astype(f32), (0, 2, 3, 1)), Cbp - Cb).astype(bf16)
    akn2 = cpad(jnp.transpose(aK_norm2.astype(f32), (0, 2, 3, 1)), Cbp - Cb).astype(bf16)
    aj1 = cpad(jnp.transpose(aJ1.astype(f32), (0, 2, 3, 1)), Cinp - Cin).astype(bf16)
    scale2 = _fuse_scale(norm2['gamma'], norm2['var'], norm2['eps'])
    w1 = conv1_w[:, :, 0, 0].astype(f32) * scale2[:, None]                 # (Cb,Cin)
    w1 = jnp.pad(w1, ((0, Cbp - Cb), (0, Cinp - Cin))).astype(bf16)

    # TODO(synk): for production spatial sizes (e.g. 56x56 on v7x's 64 MiB VMEM) add an
    # H-tile grid axis with a +2 halo and single-buffer the resident weight blocks
    # (pipeline_mode=pl.Buffered(1)); whole-image blocks are fine at these shapes.
    out = pl.pallas_call(
        functools.partial(_lrp_dense_kernel, e=e, H=H, W=W),
        out_shape=jax.ShapeDtypeStruct((B, NC, H, W, Cinp), f32),
        grid_spec=pltpu.PrefetchScalarGridSpec(
            num_scalar_prefetch=0,
            grid=(B, NC // nc_tile),                 # class axis innermost -> per-batch
            in_specs=[                               # activation blocks reused across it
                pl.BlockSpec((1, nc_tile, Hp, Wp, Kcp), lambda b, n: (b, n, 0, 0, 0)),
                pl.BlockSpec((1, Hp, Wp, Kcp), lambda b, n: (b, 0, 0, 0)),
                pl.BlockSpec((9 * Kcp, Cbp), lambda b, n: (0, 0)),
                pl.BlockSpec((1, H, W, Cbp), lambda b, n: (b, 0, 0, 0)),
                pl.BlockSpec((1, H, W, Cbp), lambda b, n: (b, 0, 0, 0)),
                pl.BlockSpec((Cbp, Cinp), lambda b, n: (0, 0)),
                pl.BlockSpec((1, H, W, Cinp), lambda b, n: (b, 0, 0, 0)),
            ],
            out_specs=pl.BlockSpec((1, nc_tile, H, W, Cinp), lambda b, n: (b, n, 0, 0, 0)),
        ),
        compiler_params=pltpu.CompilerParams(
            # only the batch axis is megacore-sharded: keeps per-batch activation blocks
            # resident across the sequential class loop on each core (v7x).
            dimension_semantics=("parallel", "arbitrary"),
            vmem_limit_bytes=_vmem_limit_bytes()),
    )(rk_pad, ak_pad, w_big, aj2, akn2, w1, aj1)

    out = out[..., :Cin]                                           # drop channel padding
    return jnp.transpose(out, (0, 1, 4, 2, 3))                     # (B, NC, Cin, H, W)


# ----------- pure-JAX reference (mirrors the kernel's bf16-operand / f32-accumulate policy,
# ----------- but keeps conv/einsum operands in f32 so it runs on any backend) -----------

def lrp_dense_layer_ref(rK_list, aK_list, aJ2, aK_norm2, aJ1,
                        conv2_w, conv1_w, bn_list, norm2, e, Ch0, Ch1):
    f32, bf16 = jnp.float32, jnp.bfloat16
    q = lambda x: x.astype(bf16).astype(f32)   # emulate bf16 HBM storage / MXU operands
    B, NC = rK_list[0].shape[:2]
    H, W = aJ2.shape[-2:]
    G = Ch1 - Ch0
    Cb = conv2_w.shape[1]
    c = jnp.zeros((B * NC, Cb, H, W), f32)
    for i in range(len(rK_list)):
        scale = _fuse_scale(bn_list[i]['gamma'][Ch0:Ch1],
                            bn_list[i]['var'][Ch0:Ch1], bn_list[i]['eps'])
        wf = conv2_w.astype(f32) * scale[:, None, None, None]
        rk = rK_list[i][:, :, Ch0:Ch1].astype(f32)
        ak = q(aK_list[i][:, Ch0:Ch1].astype(f32))[:, None]
        s = q(rk / (ak + _stab(ak, e))).reshape(B * NC, G, H, W)
        wb = q(jnp.transpose(jnp.flip(wf, (2, 3)), (1, 0, 2, 3)))          # (Cb,G,3,3)
        # f32 x f32 conv: bf16xbf16 products are exact in f32, so rounding the operands
        # reproduces the kernel's MXU numerics without needing a bf16 dot here.
        c = c + lax.conv_general_dilated(
            s, wb, (1, 1), ((1, 1), (1, 1)),
            dimension_numbers=('NCHW', 'OIHW', 'NCHW'),
            preferred_element_type=f32)
    r2 = q(aJ2.astype(f32))[:, None] * c.reshape(B, NC, Cb, H, W)
    scale2 = _fuse_scale(norm2['gamma'], norm2['var'], norm2['eps'])
    w1 = q(conv1_w[:, :, 0, 0].astype(f32) * scale2[:, None])
    ak1 = q(aK_norm2.astype(f32))[:, None]
    s1 = q(r2 / (ak1 + _stab(ak1, e)))
    c1 = jnp.einsum('bnchw,cd->bndhw', s1, w1, preferred_element_type=f32)
    return q(aJ1.astype(f32))[:, None] * c1


if __name__ == "__main__":
    B, NC, H, W = 2, 2, 8, 8          # batch, LRP classes, spatial
    Cin, Cb, G = 8, 8, 4              # dense-layer input chans, bottleneck, growth rate
    Ch0, Ch1 = Cin, Cin + G
    e = 1e-2
    eps_bn = 1e-5
    C_down = [Ch1, Ch1 + 4]           # channel counts at the 2 downstream BNs

    ks = iter(jax.random.split(jax.random.PRNGKey(0), 32))
    nrm = lambda shape, scale=1.0: scale * jax.random.normal(next(ks), shape, jnp.float32)
    uni = lambda shape: jax.random.uniform(next(ks), shape, jnp.float32, 0.5, 1.5)

    conv2_w = nrm((G, Cb, 3, 3), 0.2)
    conv1_w = nrm((Cb, Cin, 1, 1), 0.2)
    norm2 = dict(gamma=uni((Cb,)), beta=nrm((Cb,)), mean=nrm((Cb,), 0.1),
                 var=uni((Cb,)), eps=eps_bn)
    bn_list, rK_list, aK_list = [], [], []
    for Ci in C_down:
        bn_list.append(dict(gamma=uni((Ci,)), beta=nrm((Ci,)), mean=nrm((Ci,), 0.1),
                            var=uni((Ci,)), eps=eps_bn))
        rK_list.append(nrm((B, NC, Ci, H, W)))   # downstream relevances R[self.Rs[i]]
        aK_list.append(nrm((B, Ci, H, W)))       # downstream BN outputs X[self.BNOut[i]]

    aJ2 = jax.nn.relu(nrm((B, Cb, H, W)))        # X[relu2 out]
    aK_norm2 = nrm((B, Cb, H, W))                # X[norm2 out]
    aJ1 = jax.nn.relu(nrm((B, Cin, H, W)))       # X[relu1 out]
    # TODO(synk): aKConv (X[conv out]) is a forward() input of the PyTorch module but is
    # unused by the epsilon-rule BN fusion, so it is omitted here.

    # jit the wrapper so the transpose/concat/pad layout plumbing fuses into one HBM pass.
    run = jax.jit(functools.partial(lrp_dense_layer, e=e, Ch0=Ch0, Ch1=Ch1))
    out = jax.block_until_ready(
        run(rK_list, aK_list, aJ2, aK_norm2, aJ1, conv2_w, conv1_w, bn_list, norm2))
    assert out.shape == (B, NC, Cin, H, W)

    ref = lrp_dense_layer_ref(rK_list, aK_list, aJ2, aK_norm2, aJ1,
                              conv2_w, conv1_w, bn_list, norm2, e, Ch0, Ch1)
    err = float(jnp.max(jnp.abs(out - ref)) / (jnp.max(jnp.abs(ref)) + 1e-6))
    # 3e-2: bf16 MXU operands + two approx reciprocals compound (re-validated per review).
    assert err < 3e-2, f"mismatch vs reference: {err}"
    print("KERNEL_OK")
</pallas_src>

<mosaic_0001>
module attributes {stable_mosaic.version = 11 : i64} {
  func.func @_lrp_dense_kernel(%arg0: i32, %arg1: i32, %arg2: memref<1x2x10x10x128xf32, #tpu.memory_space<vmem>>, %arg3: memref<1x10x10x128xbf16, #tpu.memory_space<vmem>>, %arg4: memref<1152x128xbf16, #tpu.memory_space<vmem>>, %arg5: memref<1x8x8x128xbf16, #tpu.memory_space<vmem>>, %arg6: memref<1x8x8x128xbf16, #tpu.memory_space<vmem>>, %arg7: memref<128x128xbf16, #tpu.memory_space<vmem>>, %arg8: memref<1x8x8x128xbf16, #tpu.memory_space<vmem>>, %arg9: memref<1x2x8x8x128xf32, #tpu.memory_space<vmem>>) attributes {dimension_semantics = [#tpu.dimension_semantics<parallel>, #tpu.dimension_semantics<arbitrary>], iteration_bounds = array<i64: 2, 1>, scalar_prefetch = 0 : i64, scratch_operands = 0 : i64, tpu.core_type = #tpu.core_type<tc>, window_params = [{transform_indices = @transform_0, window_bounds = array<i64: 1, 2, 10, 10, 128>}, {transform_indices = @transform_1, window_bounds = array<i64: 1, 10, 10, 128>}, {pipeline_mode = #tpu.pipeline_mode<synchronous>, transform_indices = @transform_2, window_bounds = array<i64: 1152, 128>}, {transform_indices = @transform_3, window_bounds = array<i64: 1, 8, 8, 128>}, {transform_indices = @transform_4, window_bounds = array<i64: 1, 8, 8, 128>}, {pipeline_mode = #tpu.pipeline_mode<synchronous>, transform_indices = @transform_5, window_bounds = array<i64: 128, 128>}, {transform_indices = @transform_6, window_bounds = array<i64: 1, 8, 8, 128>}, {transform_indices = @transform_7, window_bounds = array<i64: 1, 2, 8, 8, 128>}]} {
    %c0 = arith.constant 0 : index
    %c0_0 = arith.constant 0 : index
    %c0_1 = arith.constant 0 : index
    %c0_2 = arith.constant 0 : index
    %c0_3 = arith.constant 0 : index
    %0 = vector.load %arg2[%c0, %c0_0, %c0_1, %c0_2, %c0_3] : memref<1x2x10x10x128xf32, #tpu.memory_space<vmem>>, vector<1x2x10x10x128xf32>
    %1 = vector.shape_cast %0 : vector<1x2x10x10x128xf32> to vector<2x10x10x128xf32>
    %c0_4 = arith.constant 0 : index
    %c0_5 = arith.constant 0 : index
    %c0_6 = arith.constant 0 : index
    %c0_7 = arith.constant 0 : index
    %2 = vector.load %arg3[%c0_4, %c0_5, %c0_6, %c0_7] : memref<1x10x10x128xbf16, #tpu.memory_space<vmem>>, vector<1x10x10x128xbf16>
    %3 = vector.shape_cast %2 : vector<1x10x10x128xbf16> to vector<10x10x128xbf16>
    %4 = arith.extf %3 : vector<10x10x128xbf16> to vector<10x10x128xf32>
    %cst = arith.constant 0.000000e+00 : f32
    %5 = vector.broadcast %cst : f32 to vector<10x10x128xf32>
    %6 = arith.cmpf oge, %4, %5 : vector<10x10x128xf32>
    %cst_8 = arith.constant 0.00999999977 : f32
    %cst_9 = arith.constant -0.00999999977 : f32
    %7 = vector.broadcast %cst_8 : f32 to vector<10x10x128xf32>
    %8 = vector.broadcast %cst_9 : f32 to vector<10x10x128xf32>
    %9 = arith.select %6, %7, %8 : vector<10x10x128xi1>, vector<10x10x128xf32>
    %10 = arith.addf %4, %9 : vector<10x10x128xf32>
    %11 = tpu.reciprocal %10 {approx = true} : vector<10x10x128xf32> -> vector<10x10x128xf32>
    %12 = vector.shape_cast %11 : vector<10x10x128xf32> to vector<1x10x10x128xf32>
    %13 = vector.broadcast %12 : vector<1x10x10x128xf32> to vector<2x10x10x128xf32>
    %14 = arith.mulf %1, %13 : vector<2x10x10x128xf32>
    %cst_10 = arith.constant 0.000000e+00 : f32
    %15 = vector.broadcast %cst_10 : f32 to vector<128x128xf32>
    %16 = vector.extract_strided_slice %14 {offsets = [0, 0, 0, 0], sizes = [2, 8, 8, 128], strides = [1, 1, 1, 1]} : vector<2x10x10x128xf32> to vector<2x8x8x128xf32>
    %17 = vector.shape_cast %16 : vector<2x8x8x128xf32> to vector<128x128xf32>
    %18 = arith.truncf %17 : vector<128x128xf32> to vector<128x128xbf16>
    %c0_11 = arith.constant 0 : index
    %c0_12 = arith.constant 0 : index
    %19 = vector.load %arg4[%c0_11, %c0_12] : memref<1152x128xbf16, #tpu.memory_space<vmem>>, vector<128x128xbf16>
    %cst_13 = arith.constant dense<0.000000e+00> : vector<128x128xf32>
    %20 = tpu.matmul %18, %19, %cst_13 {dimension_numbers = #tpu.dot_dimension_numbers<[1], [0], [0], [1], [0, 0, 1, 1], [], []>} : vector<128x128xbf16>, vector<128x128xbf16>, vector<128x128xf32> -> vector<128x128xf32>
    %21 = arith.addf %15, %20 : vector<128x128xf32>
    %22 = vector.extract_strided_slice %14 {offsets = [0, 0, 1, 0], sizes = [2, 8, 8, 128], strides = [1, 1, 1, 1]} : vector<2x10x10x128xf32> to vector<2x8x8x128xf32>
    %23 = vector.shape_cast %22 : vector<2x8x8x128xf32> to vector<128x128xf32>
    %24 = arith.truncf %23 : vector<128x128xf32> to vector<128x128xbf16>
    %c128 = arith.constant 128 : index
    %c0_14 = arith.constant 0 : index
    %25 = vector.load %arg4[%c128, %c0_14] : memref<1152x128xbf16, #tpu.memory_space<vmem>>, vector<128x128xbf16>
    %cst_15 = arith.constant dense<0.000000e+00> : vector<128x128xf32>
    %26 = tpu.matmul %24, %25, %cst_15 {dimension_numbers = #tpu.dot_dimension_numbers<[1], [0], [0], [1], [0, 0, 1, 1], [], []>} : vector<128x128xbf16>, vector<128x128xbf16>, vector<128x128xf32> -> vector<128x128xf32>
    %27 = arith.addf %21, %26 : vector<128x128xf32>
    %28 = vector.extract_strided_slice %14 {offsets = [0, 0, 2, 0], sizes = [2, 8, 8, 128], strides = [1, 1, 1, 1]} : vector<2x10x10x128xf32> to vector<2x8x8x128xf32>
    %29 = vector.shape_cast %28 : vector<2x8x8x128xf32> to vector<128x128xf32>
    %30 = arith.truncf %29 : vector<128x128xf32> to vector<128x128xbf16>
    %c256 = arith.constant 256 : index
    %c0_16 = arith.constant 0 : index
    %31 = vector.load %arg4[%c256, %c0_16] : memref<1152x128xbf16, #tpu.memory_space<vmem>>, vector<128x128xbf16>
    %cst_17 = arith.constant dense<0.000000e+00> : vector<128x128xf32>
    %32 = tpu.matmul %30, %31, %cst_17 {dimension_numbers = #tpu.dot_dimension_numbers<[1], [0], [0], [1], [0, 0, 1, 1], [], []>} : vector<128x128xbf16>, vector<128x128xbf16>, vector<128x128xf32> -> vector<128x128xf32>
    %33 = arith.addf %27, %32 : vector<128x128xf32>
    %34 = vector.extract_strided_slice %14 {offsets = [0, 1, 0, 0], sizes = [2, 8, 8, 128], strides = [1, 1, 1, 1]} : vector<2x10x10x128xf32> to vector<2x8x8x128xf32>
    %35 = vector.shape_cast %34 : vector<2x8x8x128xf32> to vector<128x128xf32>
    %36 = arith.truncf %35 : vector<128x128xf32> to vector<128x128xbf16>
    %c384 = arith.constant 384 : index
    %c0_18 = arith.constant 0 : index
    %37 = vector.load %arg4[%c384, %c0_18] : memref<1152x128xbf16, #tpu.memory_space<vmem>>, vector<128x128xbf16>
    %cst_19 = arith.constant dense<0.000000e+00> : vector<128x128xf32>
    %38 = tpu.matmul %36, %37, %cst_19 {dimension_numbers = #tpu.dot_dimension_numbers<[1], [0], [0], [1], [0, 0, 1, 1], [], []>} : vector<128x128xbf16>, vector<128x128xbf16>, vector<128x128xf32> -> vector<128x128xf32>
    %39 = arith.addf %33, %38 : vector<128x128xf32>
    %40 = vector.extract_strided_slice %14 {offsets = [0, 1, 1, 0], sizes = [2, 8, 8, 128], strides = [1, 1, 1, 1]} : vector<2x10x10x128xf32> to vector<2x8x8x128xf32>
    %41 = vector.shape_cast %40 : vector<2x8x8x128xf32> to vector<128x128xf32>
    %42 = arith.truncf %41 : vector<128x128xf32> to vector<128x128xbf16>
    %c512 = arith.constant 512 : index
    %c0_20 = arith.constant 0 : index
    %43 = vector.load %arg4[%c512, %c0_20] : memref<1152x128xbf16, #tpu.memory_space<vmem>>, vector<128x128xbf16>
    %cst_21 = arith.constant dense<0.000000e+00> : vector<128x128xf32>
    %44 = tpu.matmul %42, %43, %cst_21 {dimension_numbers = #tpu.dot_dimension_numbers<[1], [0], [0], [1], [0, 0, 1, 1], [], []>} : vector<128x128xbf16>, vector<128x128xbf16>, vector<128x128xf32> -> vector<128x128xf32>
    %45 = arith.addf %39, %44 : vector<128x128xf32>
    %46 = vector.extract_strided_slice %14 {offsets = [0, 1, 2, 0], sizes = [2, 8, 8, 128], strides = [1, 1, 1, 1]} : vector<2x10x10x128xf32> to vector<2x8x8x128xf32>
    %47 = vector.shape_cast %46 : vector<2x8x8x128xf32> to vector<128x128xf32>
    %48 = arith.truncf %47 : vector<128x128xf32> to vector<128x128xbf16>
    %c640 = arith.constant 640 : index
    %c0_22 = arith.constant 0 : index
    %49 = vector.load %arg4[%c640, %c0_22] : memref<1152x128xbf16, #tpu.memory_space<vmem>>, vector<128x128xbf16>
    %cst_23 = arith.constant dense<0.000000e+00> : vector<128x128xf32>
    %50 = tpu.matmul %48, %49, %cst_23 {dimension_numbers = #tpu.dot_dimension_numbers<[1], [0], [0], [1], [0, 0, 1, 1], [], []>} : vector<128x128xbf16>, vector<128x128xbf16>, vector<128x128xf32> -> vector<128x128xf32>
    %51 = arith.addf %45, %50 : vector<128x128xf32>
    %52 = vector.extract_strided_slice %14 {offsets = [0, 2, 0, 0], sizes = [2, 8, 8, 128], strides = [1, 1, 1, 1]} : vector<2x10x10x128xf32> to vector<2x8x8x128xf32>
    %53 = vector.shape_cast %52 : vector<2x8x8x128xf32> to vector<128x128xf32>
    %54 = arith.truncf %53 : vector<128x128xf32> to vector<128x128xbf16>
    %c768 = arith.constant 768 : index
    %c0_24 = arith.constant 0 : index
    %55 = vector.load %arg4[%c768, %c0_24] : memref<1152x128xbf16, #tpu.memory_space<vmem>>, vector<128x128xbf16>
    %cst_25 = arith.constant dense<0.000000e+00> : vector<128x128xf32>
    %56 = tpu.matmul %54, %55, %cst_25 {dimension_numbers = #tpu.dot_dimension_numbers<[1], [0], [0], [1], [0, 0, 1, 1], [], []>} : vector<128x128xbf16>, vector<128x128xbf16>, vector<128x128xf32> -> vector<128x128xf32>
    %57 = arith.addf %51, %56 : vector<128x128xf32>
    %58 = vector.extract_strided_slice %14 {offsets = [0, 2, 1, 0], sizes = [2, 8, 8, 128], strides = [1, 1, 1, 1]} : vector<2x10x10x128xf32> to vector<2x8x8x128xf32>
    %59 = vector.shape_cast %58 : vector<2x8x8x128xf32> to vector<128x128xf32>
    %60 = arith.truncf %59 : vector<128x128xf32> to vector<128x128xbf16>
    %c896 = arith.constant 896 : index
    %c0_26 = arith.constant 0 : index
    %61 = vector.load %arg4[%c896, %c0_26] : memref<1152x128xbf16, #tpu.memory_space<vmem>>, vector<128x128xbf16>
    %cst_27 = arith.constant dense<0.000000e+00> : vector<128x128xf32>
    %62 = tpu.matmul %60, %61, %cst_27 {dimension_numbers = #tpu.dot_dimension_numbers<[1], [0], [0], [1], [0, 0, 1, 1], [], []>} : vector<128x128xbf16>, vector<128x128xbf16>, vector<128x128xf32> -> vector<128x128xf32>
    %63 = arith.addf %57, %62 : vector<128x128xf32>
    %64 = vector.extract_strided_slice %14 {offsets = [0, 2, 2, 0], sizes = [2, 8, 8, 128], strides = [1, 1, 1, 1]} : vector<2x10x10x128xf32> to vector<2x8x8x128xf32>
    %65 = vector.shape_cast %64 : vector<2x8x8x128xf32> to vector<128x128xf32>
    %66 = arith.truncf %65 : vector<128x128xf32> to vector<128x128xbf16>
    %c1024 = arith.constant 1024 : index
    %c0_28 = arith.constant 0 : index
    %67 = vector.load %arg4[%c1024, %c0_28] : memref<1152x128xbf16, #tpu.memory_space<vmem>>, vector<128x128xbf16>
    %cst_29 = arith.constant dense<0.000000e+00> : vector<128x128xf32>
    %68 = tpu.matmul %66, %67, %cst_29 {dimension_numbers = #tpu.dot_dimension_numbers<[1], [0], [0], [1], [0, 0, 1, 1], [], []>} : vector<128x128xbf16>, vector<128x128xbf16>, vector<128x128xf32> -> vector<128x128xf32>
    %69 = arith.addf %63, %68 : vector<128x128xf32>
    %c0_30 = arith.constant 0 : index
    %c0_31 = arith.constant 0 : index
    %c0_32 = arith.constant 0 : index
    %c0_33 = arith.constant 0 : index
    %70 = vector.load %arg5[%c0_30, %c0_31, %c0_32, %c0_33] : memref<1x8x8x128xbf16, #tpu.memory_space<vmem>>, vector<1x8x8x128xbf16>
    %71 = vector.shape_cast %70 : vector<1x8x8x128xbf16> to vector<8x8x128xbf16>
    %72 = arith.extf %71 : vector<8x8x128xbf16> to vector<8x8x128xf32>
    %73 = vector.shape_cast %72 : vector<8x8x128xf32> to vector<1x64x128xf32>
    %74 = vector.shape_cast %69 : vector<128x128xf32> to vector<2x64x128xf32>
    %75 = vector.broadcast %73 : vector<1x64x128xf32> to vector<2x64x128xf32>
    %76 = arith.mulf %74, %75 : vector<2x64x128xf32>
    %c0_34 = arith.constant 0 : index
    %c0_35 = arith.constant 0 : index
    %c0_36 = arith.constant 0 : index
    %c0_37 = arith.constant 0 : index
    %77 = vector.load %arg6[%c0_34, %c0_35, %c0_36, %c0_37] : memref<1x8x8x128xbf16, #tpu.memory_space<vmem>>, vector<1x8x8x128xbf16>
    %78 = vector.shape_cast %77 : vector<1x8x8x128xbf16> to vector<8x8x128xbf16>
    %79 = arith.extf %78 : vector<8x8x128xbf16> to vector<8x8x128xf32>
    %80 = vector.shape_cast %79 : vector<8x8x128xf32> to vector<1x64x128xf32>
    %cst_38 = arith.constant 0.000000e+00 : f32
    %81 = vector.broadcast %cst_38 : f32 to vector<1x64x128xf32>
    %82 = arith.cmpf oge, %80, %81 : vector<1x64x128xf32>
    %cst_39 = arith.constant 0.00999999977 : f32
    %cst_40 = arith.constant -0.00999999977 : f32
    %83 = vector.broadcast %cst_39 : f32 to vector<1x64x128xf32>
    %84 = vector.broadcast %cst_40 : f32 to vector<1x64x128xf32>
    %85 = arith.select %82, %83, %84 : vector<1x64x128xi1>, vector<1x64x128xf32>
    %86 = arith.addf %80, %85 : vector<1x64x128xf32>
    %87 = tpu.reciprocal %86 {approx = true} : vector<1x64x128xf32> -> vector<1x64x128xf32>
    %88 = vector.broadcast %87 : vector<1x64x128xf32> to vector<2x64x128xf32>
    %89 = arith.mulf %76, %88 : vector<2x64x128xf32>
    %90 = vector.shape_cast %89 : vector<2x64x128xf32> to vector<128x128xf32>
    %91 = arith.truncf %90 : vector<128x128xf32> to vector<128x128xbf16>
    %c0_41 = arith.constant 0 : index
    %c0_42 = arith.constant 0 : index
    %92 = vector.load %arg7[%c0_41, %c0_42] : memref<128x128xbf16, #tpu.memory_space<vmem>>, vector<128x128xbf16>
    %cst_43 = arith.constant dense<0.000000e+00> : vector<128x128xf32>
    %93 = tpu.matmul %91, %92, %cst_43 {dimension_numbers = #tpu.dot_dimension_numbers<[1], [0], [0], [1], [0, 0, 1, 1], [], []>} : vector<128x128xbf16>, vector<128x128xbf16>, vector<128x128xf32> -> vector<128x128xf32>
    %c0_44 = arith.constant 0 : index
    %c0_45 = arith.constant 0 : index
    %c0_46 = arith.constant 0 : index
    %c0_47 = arith.constant 0 : index
    %94 = vector.load %arg8[%c0_44, %c0_45, %c0_46, %c0_47] : memref<1x8x8x128xbf16, #tpu.memory_space<vmem>>, vector<1x8x8x128xbf16>
    %95 = vector.shape_cast %94 : vector<1x8x8x128xbf16> to vector<8x8x128xbf16>
    %96 = arith.extf %95 : vector<8x8x128xbf16> to vector<8x8x128xf32>
    %97 = vector.shape_cast %96 : vector<8x8x128xf32> to vector<1x64x128xf32>
    %98 = vector.shape_cast %93 : vector<128x128xf32> to vector<2x64x128xf32>
    %99 = vector.broadcast %97 : vector<1x64x128xf32> to vector<2x64x128xf32>
    %100 = arith.mulf %98, %99 : vector<2x64x128xf32>
    %101 = vector.shape_cast %100 : vector<2x64x128xf32> to vector<1x2x8x8x128xf32>
    %c0_48 = arith.constant 0 : index
    %c0_49 = arith.constant 0 : index
    %c0_50 = arith.constant 0 : index
    %c0_51 = arith.constant 0 : index
    %c0_52 = arith.constant 0 : index
    %102 = vector.load %arg9[%c0_48, %c0_49, %c0_50, %c0_51, %c0_52] : memref<1x2x8x8x128xf32, #tpu.memory_space<vmem>>, vector<1x2x8x8x128xf32>
    tpu.vector_store %arg9[%c0_48, %c0_49, %c0_50, %c0_51, %c0_52], %101 {strides = array<i32>} : memref<1x2x8x8x128xf32, #tpu.memory_space<vmem>>, vector<1x2x8x8x128xf32>,
    return
  }
  func.func @transform_0(%arg0: i32, %arg1: i32) -> (i32, i32, i32, i32, i32) {
    %c0_i32 = arith.constant 0 : i32
    %c0_i32_0 = arith.constant 0 : i32
    %c0_i32_1 = arith.constant 0 : i32
    %c0_i32_2 = arith.constant 0 : i32
    return %arg0, %arg1, %c0_i32, %c0_i32_0, %c0_i32_1 : i32, i32, i32, i32, i32
  }
  func.func @transform_1(%arg0: i32, %arg1: i32) -> (i32, i32, i32, i32) {
    %c0_i32 = arith.constant 0 : i32
    %c0_i32_0 = arith.constant 0 : i32
    %c0_i32_1 = arith.constant 0 : i32
    %c0_i32_2 = arith.constant 0 : i32
    return %arg0, %c0_i32, %c0_i32_0, %c0_i32_1 : i32, i32, i32, i32
  }
  func.func @transform_2(%arg0: i32, %arg1: i32) -> (i32, i32) {
    %c0_i32 = arith.constant 0 : i32
    %c0_i32_0 = arith.constant 0 : i32
    %c0_i32_1 = arith.constant 0 : i32
    return %c0_i32, %c0_i32_0 : i32, i32
  }
  func.func @transform_3(%arg0: i32, %arg1: i32) -> (i32, i32, i32, i32) {
    %c0_i32 = arith.constant 0 : i32
    %c0_i32_0 = arith.constant 0 : i32
    %c0_i32_1 = arith.constant 0 : i32
    %c0_i32_2 = arith.constant 0 : i32
    return %arg0, %c0_i32, %c0_i32_0, %c0_i32_1 : i32, i32, i32, i32
  }
  func.func @transform_4(%arg0: i32, %arg1: i32) -> (i32, i32, i32, i32) {
    %c0_i32 = arith.constant 0 : i32
    %c0_i32_0 = arith.constant 0 : i32
    %c0_i32_1 = arith.constant 0 : i32
    %c0_i32_2 = arith.constant 0 : i32
    return %arg0, %c0_i32, %c0_i32_0, %c0_i32_1 : i32, i32, i32, i32
  }
  func.func @transform_5(%arg0: i32, %arg1: i32) -> (i32, i32) {
    %c0_i32 = arith.constant 0 : i32
    %c0_i32_0 = arith.constant 0 : i32
    %c0_i32_1 = arith.constant 0 : i32
    return %c0_i32, %c0_i32_0 : i32, i32
  }
  func.func @transform_6(%arg0: i32, %arg1: i32) -> (i32, i32, i32, i32) {
    %c0_i32 = arith.constant 0 : i32
    %c0_i32_0 = arith.constant 0 : i32
    %c0_i32_1 = arith.constant 0 : i32
    %c0_i32_2 = arith.constant 0 : i32
    return %arg0, %c0_i32, %c0_i32_0, %c0_i32_1 : i32, i32, i32, i32
  }
  func.func @transform_7(%arg0: i32, %arg1: i32) -> (i32, i32, i32, i32, i32) {
    %c0_i32 = arith.constant 0 : i32
    %c0_i32_0 = arith.constant 0 : i32
    %c0_i32_1 = arith.constant 0 : i32
    %c0_i32_2 = arith.constant 0 : i32
    return %arg0, %arg1, %c0_i32, %c0_i32_0, %c0_i32_1 : i32, i32, i32, i32, i32
  }
}

</mosaic_0001>

<llo_original>
// kernel: lrp_dense_layer.1
$region0: #{lrp_dense_layer.1}
  #allocation0 [shape = 'u32[]', space=smem, size = 0x4, offset = 0x4, fixed_abs, tag = 'smem constant byte address 0x4 - core index']
  #allocation1 [shape = 'u32[72,128]{1,0:T(1,128)}', space=vmem, size = 0x9000, scoped, tag = 'internal scratch']
  %s0 = inlined_call_operand.vmem [shape: f32[2,2,10,10,128], index: 0, kind: input, shape index: {}]
  %s1 = inlined_call_operand.vmem [shape: bf16[2,10,10,128], index: 1, kind: input, shape index: {}]
  %s2 = inlined_call_operand.vmem [shape: bf16[1152,128], index: 2, kind: input, shape index: {}]
  %s3 = inlined_call_operand.vmem [shape: bf16[2,8,8,128], index: 3, kind: input, shape index: {}]
  %s4 = inlined_call_operand.vmem [shape: bf16[2,8,8,128], index: 4, kind: input, shape index: {}]
  %s5 = inlined_call_operand.vmem [shape: bf16[128,128], index: 5, kind: input, shape index: {}]
  %s6 = inlined_call_operand.vmem [shape: bf16[2,8,8,128], index: 6, kind: input, shape index: {}]
  %s7 = inlined_call_operand.vmem [shape: f32[2,2,8,8,128], index: 7, kind: output, shape index: {}]
  %s8 = sld [smem:[#allocation0]]
  $region61: #{lrp_dense_layer.1} parent=0
    _
  %s10 = ssub.s32 1, %s8
  %s11 = scalar_select 0, %s10, %s8
  loop: start=0, step=1, limit=4
  $region2: #{lrp_dense_layer.1} parent=0 // loop_pre_header
    _
  $region3: #{lrp_dense_layer.1} parent=0 // loop_header
    %s13 = sphi 0, %s17
    %p14 = scmp.ge.s32.totalorder %s13, 4
    %s20 = sphi 0, %s32
    %s21 = sphi 0, %s28
    %s22 = sphi 0, %s20
    %s23 = sphi 0, %s21
    %s24 = sphi 0, %s22
    %s25 = sphi 0, %s23
    %s37 = sphi 0, %s39
    %s40 = sphi 0, %s37
    %s41 = sphi 0, %s40
    %s57 = sphi 0, %s41
    %s63 = sphi 0, %s65
    %s66 = sphi 0, %s63
    %s67 = sphi 0, %s66
    %s83 = sphi 0, %s67
    %s87 = sphi 0, %s87
    %s89 = sphi 0, %s87
    %s90 = sphi 0, %s89
    %s104 = sphi 0, %s90
    %s110 = sphi 0, %s112
    %s113 = sphi 0, %s110
    %s114 = sphi 0, %s113
    %s130 = sphi 0, %s114
    %s136 = sphi 0, %s138
    %s139 = sphi 0, %s136
    %s140 = sphi 0, %s139
    %s156 = sphi 0, %s140
    %s160 = sphi 0, %s160
    %s162 = sphi 0, %s160
    %s163 = sphi 0, %s162
    %s177 = sphi 0, %s163
    %s183 = sphi 0, %s185
    %s186 = sphi 0, %s183
    %s187 = sphi 0, %s186
    %s203 = sphi 0, %s187
    %s211 = sphi 0, %s213
    %s214 = sphi 0, %s211
    %s215 = sphi 0, %s214
    %s231 = sphi 0, %s215
  $region4: #{lrp_dense_layer.1} parent=0 // loop_header_branch
    %16 = sbr.rel (%p14) target = $region8
  $region5: #{lrp_dense_layer.1} parent=0 // loop_body
    %s18 = ssub.s32 %s13, 1
    %s19 = ssub.s32 %s13, 2
    %s26 = sadd.s32 1, %s21
    %p27 = scmp.ge.s32.totalorder %s26, 1
    %s28 = scalar_select %p27, 0, %s26
    %s29 = sadd.s32 1, %s20
    %s30 = scalar_select %p27, %s29, %s20
    %p31 = scmp.ge.s32.totalorder %s30, 2
    %s32 = scalar_select %p31, 0, %s30
    %s33 = ssub.s32 %s20, %s32
    %s34 = ssub.s32 %s21, %s28
    %s35 = sor.u32 %s33, %s34
    %p36 = scmp.eq.s32.totalorder %s35, 0
    %s38 = sadd.s32 %s37, 1
    %s39 = scalar_select %p36, %s37, %s38
    %p42 = pneg %p36
    %p43 = scmp.eq.s32.totalorder %s13, 1
    %p44 = por %p42, %p43
    %p45 = scmp.ne.s32.totalorder %s37, %s40
    %p46 = scmp.eq.s32.totalorder %s13, 0
    %p47 = por %p45, %p46
    %p48 = scmp.ne.s32.totalorder %s37, %s40
    %p49 = scmp.eq.s32.totalorder %s18, 1
    %p50 = por %p48, %p49
    %p51 = scmp.ne.s32.totalorder %s40, %s41
    %p52 = scmp.eq.s32.totalorder %s18, 0
    %p53 = por %p51, %p52
    %p54 = scmp.ne.s32.totalorder %s40, %s41
    %p55 = scmp.eq.s32.totalorder %s19, 1
    %p56 = por %p54, %p55
    %p58 = scmp.ne.s32.totalorder %s41, %s57
    %p59 = scmp.eq.s32.totalorder %s19, 0
    %p60 = por %p58, %p59
    %s61 = ssub.s32 %s20, %s32
    %p62 = scmp.eq.s32.totalorder %s61, 0
    %s64 = sadd.s32 %s63, 1
    %s65 = scalar_select %p62, %s63, %s64
    %p68 = pneg %p62
    %p69 = scmp.eq.s32.totalorder %s13, 1
    %p70 = por %p68, %p69
    %p71 = scmp.ne.s32.totalorder %s63, %s66
    %p72 = scmp.eq.s32.totalorder %s13, 0
    %p73 = por %p71, %p72
    %p74 = scmp.ne.s32.totalorder %s63, %s66
    %p75 = scmp.eq.s32.totalorder %s18, 1
    %p76 = por %p74, %p75
    %p77 = scmp.ne.s32.totalorder %s66, %s67
    %p78 = scmp.eq.s32.totalorder %s18, 0
    %p79 = por %p77, %p78
    %p80 = scmp.ne.s32.totalorder %s66, %s67
    %p81 = scmp.eq.s32.totalorder %s19, 1
    %p82 = por %p80, %p81
    %p84 = scmp.ne.s32.totalorder %s67, %s83
    %p85 = scmp.eq.s32.totalorder %s19, 0
    %p86 = por %p84, %p85
    %s88 = sadd.s32 %s87, 1
    %p91 = scmp.eq.s32.totalorder %s13, 1
    %p92 = scmp.ne.s32.totalorder %s87, %s89
    %p93 = scmp.eq.s32.totalorder %s13, 0
    %p94 = por %p92, %p93
    %p95 = scmp.ne.s32.totalorder %s87, %s89
    %p96 = scmp.eq.s32.totalorder %s18, 1
    %p97 = por %p95, %p96
    %p98 = scmp.ne.s32.totalorder %s89, %s90
    %p99 = scmp.eq.s32.totalorder %s18, 0
    %p100 = por %p98, %p99
    %p101 = scmp.ne.s32.totalorder %s89, %s90
    %p102 = scmp.eq.s32.totalorder %s19, 1
    %p103 = por %p101, %p102
    %p105 = scmp.ne.s32.totalorder %s90, %s104
    %p106 = scmp.eq.s32.totalorder %s19, 0
    %p107 = por %p105, %p106
    %s108 = ssub.s32 %s20, %s32
    %p109 = scmp.eq.s32.totalorder %s108, 0
    %s111 = sadd.s32 %s110, 1
    %s112 = scalar_select %p109, %s110, %s111
    %p115 = pneg %p109
    %p116 = scmp.eq.s32.totalorder %s13, 1
    %p117 = por %p115, %p116
    %p118 = scmp.ne.s32.totalorder %s110, %s113
    %p119 = scmp.eq.s32.totalorder %s13, 0
    %p120 = por %p118, %p119
    %p121 = scmp.ne.s32.totalorder %s110, %s113
    %p122 = scmp.eq.s32.totalorder %s18, 1
    %p123 = por %p121, %p122
    %p124 = scmp.ne.s32.totalorder %s113, %s114
    %p125 = scmp.eq.s32.totalorder %s18, 0
    %p126 = por %p124, %p125
    %p127 = scmp.ne.s32.totalorder %s113, %s114
    %p128 = scmp.eq.s32.totalorder %s19, 1
    %p129 = por %p127, %p128
    %p131 = scmp.ne.s32.totalorder %s114, %s130
    %p132 = scmp.eq.s32.totalorder %s19, 0
    %p133 = por %p131, %p132
    %s134 = ssub.s32 %s20, %s32
    %p135 = scmp.eq.s32.totalorder %s134, 0
    %s137 = sadd.s32 %s136, 1
    %s138 = scalar_select %p135, %s136, %s137
    %p141 = pneg %p135
    %p142 = scmp.eq.s32.totalorder %s13, 1
    %p143 = por %p141, %p142
    %p144 = scmp.ne.s32.totalorder %s136, %s139
    %p145 = scmp.eq.s32.totalorder %s13, 0
    %p146 = por %p144, %p145
    %p147 = scmp.ne.s32.totalorder %s136, %s139
    %p148 = scmp.eq.s32.totalorder %s18, 1
    %p149 = por %p147, %p148
    %p150 = scmp.ne.s32.totalorder %s139, %s140
    %p151 = scmp.eq.s32.totalorder %s18, 0
    %p152 = por %p150, %p151
    %p153 = scmp.ne.s32.totalorder %s139, %s140
    %p154 = scmp.eq.s32.totalorder %s19, 1
    %p155 = por %p153, %p154
    %p157 = scmp.ne.s32.totalorder %s140, %s156
    %p158 = scmp.eq.s32.totalorder %s19, 0
    %p159 = por %p157, %p158
    %s161 = sadd.s32 %s160, 1
    %p164 = scmp.eq.s32.totalorder %s13, 1
    %p165 = scmp.ne.s32.totalorder %s160, %s162
    %p166 = scmp.eq.s32.totalorder %s13, 0
    %p167 = por %p165, %p166
    %p168 = scmp.ne.s32.totalorder %s160, %s162
    %p169 = scmp.eq.s32.totalorder %s18, 1
    %p170 = por %p168, %p169
    %p171 = scmp.ne.s32.totalorder %s162, %s163
    %p172 = scmp.eq.s32.totalorder %s18, 0
    %p173 = por %p171, %p172
    %p174 = scmp.ne.s32.totalorder %s162, %s163
    %p175 = scmp.eq.s32.totalorder %s19, 1
    %p176 = por %p174, %p175
    %p178 = scmp.ne.s32.totalorder %s163, %s177
    %p179 = scmp.eq.s32.totalorder %s19, 0
    %p180 = por %p178, %p179
    %s181 = ssub.s32 %s20, %s32
    %p182 = scmp.eq.s32.totalorder %s181, 0
    %s184 = sadd.s32 %s183, 1
    %s185 = scalar_select %p182, %s183, %s184
    %p188 = pneg %p182
    %p189 = scmp.eq.s32.totalorder %s13, 1
    %p190 = por %p188, %p189
    %p191 = scmp.ne.s32.totalorder %s183, %s186
    %p192 = scmp.eq.s32.totalorder %s13, 0
    %p193 = por %p191, %p192
    %p194 = scmp.ne.s32.totalorder %s183, %s186
    %p195 = scmp.eq.s32.totalorder %s18, 1
    %p196 = por %p194, %p195
    %p197 = scmp.ne.s32.totalorder %s186, %s187
    %p198 = scmp.eq.s32.totalorder %s18, 0
    %p199 = por %p197, %p198
    %p200 = scmp.ne.s32.totalorder %s186, %s187
    %p201 = scmp.eq.s32.totalorder %s19, 1
    %p202 = por %p200, %p201
    %p204 = scmp.ne.s32.totalorder %s187, %s203
    %p205 = scmp.eq.s32.totalorder %s19, 0
    %p206 = por %p204, %p205
    %s207 = ssub.s32 %s20, %s32
    %s208 = ssub.s32 %s21, %s28
    %s209 = sor.u32 %s207, %s208
    %p210 = scmp.eq.s32.totalorder %s209, 0
    %s212 = sadd.s32 %s211, 1
    %s213 = scalar_select %p210, %s211, %s212
    %p216 = pneg %p210
    %p217 = scmp.eq.s32.totalorder %s13, 1
    %p218 = por %p216, %p217
    %p219 = scmp.ne.s32.totalorder %s211, %s214
    %p220 = scmp.eq.s32.totalorder %s13, 0
    %p221 = por %p219, %p220
    %p222 = scmp.ne.s32.totalorder %s211, %s214
    %p223 = scmp.eq.s32.totalorder %s18, 1
    %p224 = por %p222, %p223
    %p225 = scmp.ne.s32.totalorder %s214, %s215
    %p226 = scmp.eq.s32.totalorder %s18, 0
    %p227 = por %p225, %p226
    %p228 = scmp.ne.s32.totalorder %s214, %s215
    %p229 = scmp.eq.s32.totalorder %s19, 1
    %p230 = por %p228, %p229
    %p232 = scmp.ne.s32.totalorder %s215, %s231
    %p233 = scmp.eq.s32.totalorder %s19, 0
    %p234 = por %p232, %p233
    %p235 = scmp.le.s32.totalorder 1, %s13
    %p236 = scmp.lt.s32.totalorder %s13, 3
    %p237 = pnand %p235, %p236
    %p238 = pneg %p237
    // Predicated region
    $region9: #{lrp_dense_layer.1} parent=5 // pred_check
      _
    $region10: #{lrp_dense_layer.1} parent=5 // pred_check_branch
      %240 = sbr.rel (%p237) target = $region12
    $region11: #{lrp_dense_layer.1} parent=5 // pred_region
      %s241 = ssub.s32 %s13, 1
      // Predicated region
      $region13: #{lrp_dense_layer.1} parent=11 // pred_check
        %p242 = pneg %p100
      $region14: #{lrp_dense_layer.1} parent=11 // pred_check_branch
        %244 = sbr.rel (%p242) target = $region16
      $region15: #{lrp_dense_layer.1} parent=11 // pred_region
        _
      $region16: #{lrp_dense_layer.1} parent=11 // pred_fallthru
        _
      // Predicated region
      $region17: #{lrp_dense_layer.1} parent=11 // pred_check
        %p245 = pneg %p173
      $region18: #{lrp_dense_layer.1} parent=11 // pred_check_branch
        %247 = sbr.rel (%p245) target = $region20
      $region19: #{lrp_dense_layer.1} parent=11 // pred_region
        _
      $region20: #{lrp_dense_layer.1} parent=11 // pred_fallthru
        _
    $region12: #{lrp_dense_layer.1} parent=5 // pred_fallthru
      _
    %p248 = scmp.lt.s32.totalorder %s13, 2
    // Predicated region
    $region21: #{lrp_dense_layer.1} parent=5 // pred_check
      %p249 = pneg %p248
    $region22: #{lrp_dense_layer.1} parent=5 // pred_check_branch
      %251 = sbr.rel (%p249) target = $region24
    $region23: #{lrp_dense_layer.1} parent=5 // pred_region
      // Predicated region
      $region25: #{lrp_dense_layer.1} parent=23 // pred_check
        %p252 = pneg %p47
      $region26: #{lrp_dense_layer.1} parent=23 // pred_check_branch
        %254 = sbr.rel (%p252) target = $region28
      $region27: #{lrp_dense_layer.1} parent=23 // pred_region
        %s255 = smul.u32 2, %s21
        %p256 = scmp.lt.s32.totalorder %s20, 1
        %s257 = scalar_select %p256, %s20, 1
        %p258 = scmp.lt.s32.totalorder %s255, 1
        %s259 = scalar_select %p258, %s255, 1
        %s260 = smul.addr %s259, 20
        %s261 = smul.addr %s257, 40
        %s262 = sadd.s32 %s260, %s261
        %s263 = smul.addr %s262, 8
        %s264 = scalar_lea.vmem %s0, %s263
        %s265 = smul.u32 2, %s21
      $region28: #{lrp_dense_layer.1} parent=23 // pred_fallthru
        _
      // Predicated region
      $region29: #{lrp_dense_layer.1} parent=23 // pred_check
        %p266 = pneg %p73
      $region30: #{lrp_dense_layer.1} parent=23 // pred_check_branch
        %268 = sbr.rel (%p266) target = $region32
      $region31: #{lrp_dense_layer.1} parent=23 // pred_region
        %p269 = scmp.lt.s32.totalorder %s20, 1
        %s270 = scalar_select %p269, %s20, 1
        %s271 = smul.addr %s270, 20
        %s272 = smul.addr %s271, 4
        %s273 = scalar_lea.vmem %s1, %s272
      $region32: #{lrp_dense_layer.1} parent=23 // pred_fallthru
        _
      // Predicated region
      $region33: #{lrp_dense_layer.1} parent=23 // pred_check
        %p274 = pneg %p120
      $region34: #{lrp_dense_layer.1} parent=23 // pred_check_branch
        %276 = sbr.rel (%p274) target = $region36
      $region35: #{lrp_dense_layer.1} parent=23 // pred_region
        %p277 = scmp.lt.s32.totalorder %s20, 1
        %s278 = scalar_select %p277, %s20, 1
        %s279 = smul.addr %s278, 8
        %s280 = smul.addr %s279, 4
        %s281 = scalar_lea.vmem %s3, %s280
      $region36: #{lrp_dense_layer.1} parent=23 // pred_fallthru
        _
      // Predicated region
      $region37: #{lrp_dense_layer.1} parent=23 // pred_check
        %p282 = pneg %p146
      $region38: #{lrp_dense_layer.1} parent=23 // pred_check_branch
        %284 = sbr.rel (%p282) target = $region40
      $region39: #{lrp_dense_layer.1} parent=23 // pred_region
        %p285 = scmp.lt.s32.totalorder %s20, 1
        %s286 = scalar_select %p285, %s20, 1
        %s287 = smul.addr %s286, 8
        %s288 = smul.addr %s287, 4
        %s289 = scalar_lea.vmem %s4, %s288
      $region40: #{lrp_dense_layer.1} parent=23 // pred_fallthru
        _
      // Predicated region
      $region41: #{lrp_dense_layer.1} parent=23 // pred_check
        %p290 = pneg %p193
      $region42: #{lrp_dense_layer.1} parent=23 // pred_check_branch
        %292 = sbr.rel (%p290) target = $region44
      $region43: #{lrp_dense_layer.1} parent=23 // pred_region
        %p293 = scmp.lt.s32.totalorder %s20, 1
        %s294 = scalar_select %p293, %s20, 1
        %s295 = smul.addr %s294, 8
        %s296 = smul.addr %s295, 4
        %s297 = scalar_lea.vmem %s6, %s296
      $region44: #{lrp_dense_layer.1} parent=23 // pred_fallthru
        _
    $region24: #{lrp_dense_layer.1} parent=5 // pred_fallthru
      _
    %p298 = scmp.le.s32.totalorder 1, %s13
    %p299 = scmp.lt.s32.totalorder %s13, 3
    %p300 = pnand %p298, %p299
    %p301 = pneg %p300
    // Predicated region
    $region45: #{lrp_dense_layer.1} parent=5 // pred_check
      _
    $region46: #{lrp_dense_layer.1} parent=5 // pred_check_branch
      %303 = sbr.rel (%p300) target = $region48
    $region47: #{lrp_dense_layer.1} parent=5 // pred_region
      %s304 = ssub.s32 %s13, 1
      %s305 = smul.u32 2, %s23
      %p306 = scmp.lt.s32.totalorder %s22, 1
      %s307 = scalar_select %p306, %s22, 1
      %p308 = scmp.lt.s32.totalorder %s305, 1
      %s309 = scalar_select %p308, %s305, 1
      %s310 = smul.addr %s309, 20
      %s311 = smul.addr %s307, 40
      %s312 = sadd.s32 %s310, %s311
      %s313 = smul.addr %s312, 8
      %s314 = scalar_lea.vmem %s0, %s313
      %p315 = pneg %p53
      %p316 = pneg %p50
      %p317 = scmp.lt.s32.totalorder %s22, 1
      %s318 = scalar_select %p317, %s22, 1
      %s319 = smul.addr %s318, 20
      %s320 = smul.addr %s319, 4
      %s321 = scalar_lea.vmem %s1, %s320
      %p322 = pneg %p79
      %p323 = pneg %p76
      %p324 = pneg %p100
      %p325 = pneg %p97
      %p326 = scmp.lt.s32.totalorder %s22, 1
      %s327 = scalar_select %p326, %s22, 1
      %s328 = smul.addr %s327, 8
      %s329 = smul.addr %s328, 4
      %s330 = scalar_lea.vmem %s3, %s329
      %p331 = pneg %p126
      %p332 = pneg %p123
      %p333 = scmp.lt.s32.totalorder %s22, 1
      %s334 = scalar_select %p333, %s22, 1
      %s335 = smul.addr %s334, 8
      %s336 = smul.addr %s335, 4
      %s337 = scalar_lea.vmem %s4, %s336
      %p338 = pneg %p152
      %p339 = pneg %p149
      %p340 = pneg %p173
      %p341 = pneg %p170
      %p342 = scmp.lt.s32.totalorder %s22, 1
      %s343 = scalar_select %p342, %s22, 1
      %s344 = smul.addr %s343, 8
      %s345 = smul.addr %s344, 4
      %s346 = scalar_lea.vmem %s6, %s345
      %p347 = pneg %p199
      %p348 = pneg %p196
      %p349 = pneg %p227
      %p350 = pneg %p224
      %s351 = smul.u32 2, %s23
      %p352 = scmp.lt.s32.totalorder %s22, 1
      %s353 = scalar_select %p352, %s22, 1
      %p354 = scmp.lt.s32.totalorder %s351, 1
      %s355 = scalar_select %p354, %s351, 1
      %s356 = smul.addr %s355, 8
      %s357 = smul.addr %s353, 16
      %s358 = sadd.s32 %s356, %s357
      %s359 = smul.addr %s358, 8
      %s360 = scalar_lea.vmem %s7, %s359
      %s361 = smul.u32 2, %s23
      %p362 = scmp.lt.s32.totalorder %s22, 1
      %s363 = scalar_select %p362, %s22, 1
      %p364 = scmp.lt.s32.totalorder %s361, 1
      %s365 = scalar_select %p364, %s361, 1
      %s366 = smul.addr %s365, 20
      %s367 = smul.addr %s363, 40
      %s368 = sadd.s32 %s366, %s367
      %s369 = smul.addr %s368, 8
      %s370 = scalar_lea.vmem %s0, %s369
      %s371 = smul.u32 2, %s23
      %p372 = scmp.lt.s32.totalorder %s22, 1
      %s373 = scalar_select %p372, %s22, 1
      %s374 = smul.addr %s373, 20
      %s375 = smul.addr %s374, 4
      %s376 = scalar_lea.vmem %s1, %s375
      %p377 = scmp.lt.s32.totalorder %s22, 1
      %s378 = scalar_select %p377, %s22, 1
      %s379 = smul.addr %s378, 8
      %s380 = smul.addr %s379, 4
      %s381 = scalar_lea.vmem %s3, %s380
      %p382 = scmp.lt.s32.totalorder %s22, 1
      %s383 = scalar_select %p382, %s22, 1
      %s384 = smul.addr %s383, 8
      %s385 = smul.addr %s384, 4
      %s386 = scalar_lea.vmem %s4, %s385
      %p387 = scmp.lt.s32.totalorder %s22, 1
      %s388 = scalar_select %p387, %s22, 1
      %s389 = smul.addr %s388, 8
      %s390 = smul.addr %s389, 4
      %s391 = scalar_lea.vmem %s6, %s390
      %s392 = smul.u32 2, %s23
      %p393 = scmp.lt.s32.totalorder %s22, 1
      %s394 = scalar_select %p393, %s22, 1
      %p395 = scmp.lt.s32.totalorder %s392, 1
      %s396 = scalar_select %p395, %s392, 1
      %s397 = smul.addr %s396, 8
      %s398 = smul.addr %s394, 16
      %s399 = sadd.s32 %s397, %s398
      %s400 = smul.addr %s399, 8
      %s401 = scalar_lea.vmem %s7, %s400
      %s402 = smul.u32 2, %s23
      %v403 = vld [vmem:[%s370] sm:$0xff]
      %v404 = vld [vmem:[%s370 + $0x8] sm:$0x3]
      %v405 = vld [vmem:[%s370 + $0x10] sm:$0xff]
      %v406 = vld [vmem:[%s370 + $0x18] sm:$0x3]
      %v407 = vld [vmem:[%s370 + $0x20] sm:$0xff]
      %v408 = vld [vmem:[%s370 + $0x28] sm:$0x3]
      %v409 = vld [vmem:[%s370 + $0x30] sm:$0xff]
      %v410 = vld [vmem:[%s370 + $0x38] sm:$0x3]
      %v411 = vld [vmem:[%s370 + $0x40] sm:$0xff]
      %v412 = vld [vmem:[%s370 + $0x48] sm:$0x3]
      %v413 = vld [vmem:[%s370 + $0x50] sm:$0xff]
      %v414 = vld [vmem:[%s370 + $0x58] sm:$0x3]
      %v415 = vld [vmem:[%s370 + $0x60] sm:$0xff]
      %v416 = vld [vmem:[%s370 + $0x68] sm:$0x3]
      %v417 = vld [vmem:[%s370 + $0x70] sm:$0xff]
      %v418 = vld [vmem:[%s370 + $0x78] sm:$0x3]
      %v419 = vld [vmem:[%s370 + $0x80] sm:$0xff]
      %v420 = vld [vmem:[%s370 + $0x88] sm:$0x3]
      %v421 = vld [vmem:[%s370 + $0x90] sm:$0xff]
      %v422 = vld [vmem:[%s370 + $0x98] sm:$0x3]
      %v423 = vld [vmem:[%s370 + $0xa0] sm:$0xff]
      %v424 = vld [vmem:[%s370 + $0xa8] sm:$0x3]
      %v425 = vld [vmem:[%s370 + $0xb0] sm:$0xff]
      %v426 = vld [vmem:[%s370 + $0xb8] sm:$0x3]
      %v427 = vld [vmem:[%s370 + $0xc0] sm:$0xff]
      %v428 = vld [vmem:[%s370 + $0xc8] sm:$0x3]
      %v429 = vld [vmem:[%s370 + $0xd0] sm:$0xff]
      %v430 = vld [vmem:[%s370 + $0xd8] sm:$0x3]
      %v431 = vld [vmem:[%s370 + $0xe0] sm:$0xff]
      %v432 = vld [vmem:[%s370 + $0xe8] sm:$0x3]
      %v433 = vld [vmem:[%s370 + $0xf0] sm:$0xff]
      %v434 = vld [vmem:[%s370 + $0xf8] sm:$0x3]
      %v435 = vld [vmem:[%s370 + $0x100] sm:$0xff]
      %v436 = vld [vmem:[%s370 + $0x108] sm:$0x3]
      %v437 = vld [vmem:[%s370 + $0x110] sm:$0xff]
      %v438 = vld [vmem:[%s370 + $0x118] sm:$0x3]
      %v439 = vld [vmem:[%s370 + $0x120] sm:$0xff]
      %v440 = vld [vmem:[%s370 + $0x128] sm:$0x3]
      %v441 = vld [vmem:[%s370 + $0x130] sm:$0xff]
      %v442 = vld [vmem:[%s370 + $0x138] sm:$0x3]
      %v443 = vld [vmem:[%s376] sm:$0xf]
      %v444 = vld [vmem:[%s376 + $0x4] sm:$0x1]
      %v445 = vld [vmem:[%s376 + $0x8] sm:$0xf]
      %v446 = vld [vmem:[%s376 + $0xc] sm:$0x1]
      %v447 = vld [vmem:[%s376 + $0x10] sm:$0xf]
      %v448 = vld [vmem:[%s376 + $0x14] sm:$0x1]
      %v449 = vld [vmem:[%s376 + $0x18] sm:$0xf]
      %v450 = vld [vmem:[%s376 + $0x1c] sm:$0x1]
      %v451 = vld [vmem:[%s376 + $0x20] sm:$0xf]
      %v452 = vld [vmem:[%s376 + $0x24] sm:$0x1]
      %v453 = vld [vmem:[%s376 + $0x28] sm:$0xf]
      %v454 = vld [vmem:[%s376 + $0x2c] sm:$0x1]
      %v455 = vld [vmem:[%s376 + $0x30] sm:$0xf]
      %v456 = vld [vmem:[%s376 + $0x34] sm:$0x1]
      %v457 = vld [vmem:[%s376 + $0x38] sm:$0xf]
      %v458 = vld [vmem:[%s376 + $0x3c] sm:$0x1]
      %v459 = vld [vmem:[%s376 + $0x40] sm:$0xf]
      %v460 = vld [vmem:[%s376 + $0x44] sm:$0x1]
      %v461 = vld [vmem:[%s376 + $0x48] sm:$0xf]
      %v462 = vld [vmem:[%s376 + $0x4c] sm:$0x1]
      %v463 = vunpack.c.l.bf16 %v443
      %v464 = vunpack.c.l.bf16 %v444
      %v465 = vunpack.c.l.bf16 %v445
      %v466 = vunpack.c.l.bf16 %v446
      %v467 = vunpack.c.l.bf16 %v447
      %v468 = vunpack.c.l.bf16 %v448
      %v469 = vunpack.c.l.bf16 %v449
      %v470 = vunpack.c.l.bf16 %v450
      %v471 = vunpack.c.l.bf16 %v451
      %v472 = vunpack.c.l.bf16 %v452
      %v473 = vunpack.c.l.bf16 %v453
      %v474 = vunpack.c.l.bf16 %v454
      %v475 = vunpack.c.l.bf16 %v455
      %v476 = vunpack.c.l.bf16 %v456
      %v477 = vunpack.c.l.bf16 %v457
      %v478 = vunpack.c.l.bf16 %v458
      %v479 = vunpack.c.l.bf16 %v459
      %v480 = vunpack.c.l.bf16 %v460
      %v481 = vunpack.c.l.bf16 %v461
      %v482 = vunpack.c.l.bf16 %v462
      %vm483 = vcmp.ge.f32.partialorder %v463, 0.0
      %vm484 = vcmp.ge.f32.partialorder %v464, 0.0
      %vm485 = vcmp.ge.f32.partialorder %v465, 0.0
      %vm486 = vcmp.ge.f32.partialorder %v466, 0.0
      %vm487 = vcmp.ge.f32.partialorder %v467, 0.0
      %vm488 = vcmp.ge.f32.partialorder %v468, 0.0
      %vm489 = vcmp.ge.f32.partialorder %v469, 0.0
      %vm490 = vcmp.ge.f32.partialorder %v470, 0.0
      %vm491 = vcmp.ge.f32.partialorder %v471, 0.0
      %vm492 = vcmp.ge.f32.partialorder %v472, 0.0
      %vm493 = vcmp.ge.f32.partialorder %v473, 0.0
      %vm494 = vcmp.ge.f32.partialorder %v474, 0.0
      %vm495 = vcmp.ge.f32.partialorder %v475, 0.0
      %vm496 = vcmp.ge.f32.partialorder %v476, 0.0
      %vm497 = vcmp.ge.f32.partialorder %v477, 0.0
      %vm498 = vcmp.ge.f32.partialorder %v478, 0.0
      %vm499 = vcmp.ge.f32.partialorder %v479, 0.0
      %vm500 = vcmp.ge.f32.partialorder %v480, 0.0
      %vm501 = vcmp.ge.f32.partialorder %v481, 0.0
      %vm502 = vcmp.ge.f32.partialorder %v482, 0.0
      %v503 = vsel %vm483, 0.01, -0.01
      %v504 = vsel %vm484, 0.01, -0.01
      %v505 = vsel %vm485, 0.01, -0.01
      %v506 = vsel %vm486, 0.01, -0.01
      %v507 = vsel %vm487, 0.01, -0.01
      %v508 = vsel %vm488, 0.01, -0.01
      %v509 = vsel %vm489, 0.01, -0.01
      %v510 = vsel %vm490, 0.01, -0.01
      %v511 = vsel %vm491, 0.01, -0.01
      %v512 = vsel %vm492, 0.01, -0.01
      %v513 = vsel %vm493, 0.01, -0.01
      %v514 = vsel %vm494, 0.01, -0.01
      %v515 = vsel %vm495, 0.01, -0.01
      %v516 = vsel %vm496, 0.01, -0.01
      %v517 = vsel %vm497, 0.01, -0.01
      %v518 = vsel %vm498, 0.01, -0.01
      %v519 = vsel %vm499, 0.01, -0.01
      %v520 = vsel %vm500, 0.01, -0.01
      %v521 = vsel %vm501, 0.01, -0.01
      %v522 = vsel %vm502, 0.01, -0.01
      %v523 = vadd.f32 %v463, %v503
      %v524 = vadd.f32 %v464, %v504
      %v525 = vadd.f32 %v465, %v505
      %v526 = vadd.f32 %v466, %v506
      %v527 = vadd.f32 %v467, %v507
      %v528 = vadd.f32 %v468, %v508
      %v529 = vadd.f32 %v469, %v509
      %v530 = vadd.f32 %v470, %v510
      %v531 = vadd.f32 %v471, %v511
      %v532 = vadd.f32 %v472, %v512
      %v533 = vadd.f32 %v473, %v513
      %v534 = vadd.f32 %v474, %v514
      %v535 = vadd.f32 %v475, %v515
      %v536 = vadd.f32 %v476, %v516
      %v537 = vadd.f32 %v477, %v517
      %v538 = vadd.f32 %v478, %v518
      %v539 = vadd.f32 %v479, %v519
      %v540 = vadd.f32 %v480, %v520
      %v541 = vadd.f32 %v481, %v521
      %v542 = vadd.f32 %v482, %v522
      %v543 = vrcp.pop %v523
      %v544 = vrcp.pop %v524
      %v545 = vrcp.pop %v525
      %v546 = vrcp.pop %v526
      %v547 = vrcp.pop %v527
      %v548 = vrcp.pop %v528
      %v549 = vrcp.pop %v529
      %v550 = vrcp.pop %v530
      %v551 = vrcp.pop %v531
      %v552 = vrcp.pop %v532
      %v553 = vrcp.pop %v533
      %v554 = vrcp.pop %v534
      %v555 = vrcp.pop %v535
      %v556 = vrcp.pop %v536
      %v557 = vrcp.pop %v537
      %v558 = vrcp.pop %v538
      %v559 = vrcp.pop %v539
      %v560 = vrcp.pop %v540
      %v561 = vrcp.pop %v541
      %v562 = vrcp.pop %v542
      %v563 = vmul.f32 %v403, %v543
      %v564 = vmul.f32 %v404, %v544
      %v565 = vmul.f32 %v405, %v545
      %v566 = vmul.f32 %v406, %v546
      %v567 = vmul.f32 %v407, %v547
      %v568 = vmul.f32 %v408, %v548
      %v569 = vmul.f32 %v409, %v549
      %v570 = vmul.f32 %v410, %v550
      %v571 = vmul.f32 %v411, %v551
      %v572 = vmul.f32 %v412, %v552
      %v573 = vmul.f32 %v413, %v553
      %v574 = vmul.f32 %v414, %v554
      %v575 = vmul.f32 %v415, %v555
      %v576 = vmul.f32 %v416, %v556
      %v577 = vmul.f32 %v417, %v557
      %v578 = vmul.f32 %v418, %v558
      %v579 = vmul.f32 %v419, %v559
      %v580 = vmul.f32 %v420, %v560
      %v581 = vmul.f32 %v421, %v561
      %v582 = vmul.f32 %v422, %v562
      %v583 = vmul.f32 %v423, %v543
      %v584 = vmul.f32 %v424, %v544
      %v585 = vmul.f32 %v425, %v545
      %v586 = vmul.f32 %v426, %v546
      %v587 = vmul.f32 %v427, %v547
      %v588 = vmul.f32 %v428, %v548
      %v589 = vmul.f32 %v429, %v549
      %v590 = vmul.f32 %v430, %v550
      %v591 = vmul.f32 %v431, %v551
      %v592 = vmul.f32 %v432, %v552
      %v593 = vmul.f32 %v433, %v553
      %v594 = vmul.f32 %v434, %v554
      %v595 = vmul.f32 %v435, %v555
      %v596 = vmul.f32 %v436, %v556
      %v597 = vmul.f32 %v437, %v557
      %v598 = vmul.f32 %v438, %v558
      %v599 = vmul.f32 %v439, %v559
      %v600 = vmul.f32 %v440, %v560
      %v601 = vmul.f32 %v441, %v561
      %v602 = vmul.f32 %v442, %v562
      %v603 = vpack.c.bf16 %v565, %v563
      %v604 = vpack.c.bf16 %v569, %v567
      %v605 = vpack.c.bf16 %v573, %v571
      %v606 = vpack.c.bf16 %v577, %v575
      %v607 = vpack.c.bf16 %v585, %v583
      %v608 = vpack.c.bf16 %v589, %v587
      %v609 = vpack.c.bf16 %v593, %v591
      %v610 = vpack.c.bf16 %v597, %v595
      %v611 = vld [vmem:[%s2] sm:$0xf]
      %v612 = vld [vmem:[%s2 + $0x4] sm:$0xf]
      %v613 = vld [vmem:[%s2 + $0x8] sm:$0xf]
      %v614 = vld [vmem:[%s2 + $0xc] sm:$0xf]
      %v615 = vld [vmem:[%s2 + $0x10] sm:$0xf]
      %v616 = vld [vmem:[%s2 + $0x14] sm:$0xf]
      %v617 = vld [vmem:[%s2 + $0x18] sm:$0xf]
      %v618 = vld [vmem:[%s2 + $0x1c] sm:$0xf]
      %v619 = vld [vmem:[%s2 + $0x20] sm:$0xf]
      %v620 = vld [vmem:[%s2 + $0x24] sm:$0xf]
      %v621 = vld [vmem:[%s2 + $0x28] sm:$0xf]
      %v622 = vld [vmem:[%s2 + $0x2c] sm:$0xf]
      %v623 = vld [vmem:[%s2 + $0x30] sm:$0xf]
      %v624 = vld [vmem:[%s2 + $0x34] sm:$0xf]
      %v625 = vld [vmem:[%s2 + $0x38] sm:$0xf]
      %v626 = vld [vmem:[%s2 + $0x3c] sm:$0xf]
      %vm659 = vcmask 1046528
      %v660 = vrot.slane %v563, 1
      %v661 = vrot.slane %v564, 1
      %v662 = vsel %vm659, %v660, %v661
      %v663 = vrot.slane %v565, 1
      %v664 = vrot.slane %v566, 1
      %v665 = vsel %vm659, %v663, %v664
      %v666 = vrot.slane %v567, 1
      %v667 = vrot.slane %v568, 1
      %v668 = vsel %vm659, %v666, %v667
      %v669 = vrot.slane %v569, 1
      %v670 = vrot.slane %v570, 1
      %v671 = vsel %vm659, %v669, %v670
      %v672 = vrot.slane %v571, 1
      %v673 = vrot.slane %v572, 1
      %v674 = vsel %vm659, %v672, %v673
      %v675 = vrot.slane %v573, 1
      %v676 = vrot.slane %v574, 1
      %v677 = vsel %vm659, %v675, %v676
      %v678 = vrot.slane %v575, 1
      %v679 = vrot.slane %v576, 1
      %v680 = vsel %vm659, %v678, %v679
      %v681 = vrot.slane %v577, 1
      %v682 = vrot.slane %v578, 1
      %v683 = vsel %vm659, %v681, %v682
      %v684 = vrot.slane %v583, 1
      %v685 = vrot.slane %v584, 1
      %v686 = vsel %vm659, %v684, %v685
      %v687 = vrot.slane %v585, 1
      %v688 = vrot.slane %v586, 1
      %v689 = vsel %vm659, %v687, %v688
      %v690 = vrot.slane %v587, 1
      %v691 = vrot.slane %v588, 1
      %v692 = vsel %vm659, %v690, %v691
      %v693 = vrot.slane %v589, 1
      %v694 = vrot.slane %v590, 1
      %v695 = vsel %vm659, %v693, %v694
      %v696 = vrot.slane %v591, 1
      %v697 = vrot.slane %v592, 1
      %v698 = vsel %vm659, %v696, %v697
      %v699 = vrot.slane %v593, 1
      %v700 = vrot.slane %v594, 1
      %v701 = vsel %vm659, %v699, %v700
      %v702 = vrot.slane %v595, 1
      %v703 = vrot.slane %v596, 1
      %v704 = vsel %vm659, %v702, %v703
      %v705 = vrot.slane %v597, 1
      %v706 = vrot.slane %v598, 1
      %v707 = vsel %vm659, %v705, %v706
      %v724 = vpack.c.bf16 %v665, %v662
      %v725 = vpack.c.bf16 %v671, %v668
      %v726 = vpack.c.bf16 %v677, %v674
      %v727 = vpack.c.bf16 %v683, %v680
      %v728 = vpack.c.bf16 %v689, %v686
      %v729 = vpack.c.bf16 %v695, %v692
      %v730 = vpack.c.bf16 %v701, %v698
      %v731 = vpack.c.bf16 %v707, %v704
      %v732 = vld [vmem:[%s2 + $0x40] sm:$0xf]
      %v733 = vld [vmem:[%s2 + $0x44] sm:$0xf]
      %v734 = vld [vmem:[%s2 + $0x48] sm:$0xf]
      %v735 = vld [vmem:[%s2 + $0x4c] sm:$0xf]
      %v736 = vld [vmem:[%s2 + $0x50] sm:$0xf]
      %v737 = vld [vmem:[%s2 + $0x54] sm:$0xf]
      %v738 = vld [vmem:[%s2 + $0x58] sm:$0xf]
      %v739 = vld [vmem:[%s2 + $0x5c] sm:$0xf]
      %v740 = vld [vmem:[%s2 + $0x60] sm:$0xf]
      %v741 = vld [vmem:[%s2 + $0x64] sm:$0xf]
      %v742 = vld [vmem:[%s2 + $0x68] sm:$0xf]
      %v743 = vld [vmem:[%s2 + $0x6c] sm:$0xf]
      %v744 = vld [vmem:[%s2 + $0x70] sm:$0xf]
      %v745 = vld [vmem:[%s2 + $0x74] sm:$0xf]
      %v746 = vld [vmem:[%s2 + $0x78] sm:$0xf]
      %v747 = vld [vmem:[%s2 + $0x7c] sm:$0xf]
      %v764 = vunpack.c.l.b16 %v732
      %v765 = vunpack.c.l.b16 %v733
      %v766 = vunpack.c.l.b16 %v734
      %v767 = vunpack.c.l.b16 %v735
      %v768 = vunpack.c.l.b16 %v736
      %v769 = vunpack.c.l.b16 %v737
      %v770 = vunpack.c.l.b16 %v738
      %v771 = vunpack.c.l.b16 %v739
      %v772 = vunpack.c.l.b16 %v740
      %v773 = vunpack.c.l.b16 %v741
      %v774 = vunpack.c.l.b16 %v742
      %v775 = vunpack.c.l.b16 %v743
      %v776 = vunpack.c.l.b16 %v744
      %v777 = vunpack.c.l.b16 %v745
      %v778 = vunpack.c.l.b16 %v746
      %v779 = vunpack.c.l.b16 %v747
      %v780 = vpack.c.b16 %v765, %v764
      %v781 = vpack.c.b16 %v767, %v766
      %v782 = vpack.c.b16 %v769, %v768
      %v783 = vpack.c.b16 %v771, %v770
      %v784 = vpack.c.b16 %v773, %v772
      %v785 = vpack.c.b16 %v775, %v774
      %v786 = vpack.c.b16 %v777, %v776
      %v787 = vpack.c.b16 %v779, %v778
      %796 = vmatpush.bf16.msra.mxu0 %v787
      %797 = vmatpush.bf16.msra.mxu0 %v786
      %798 = vmatpush.bf16.msra.mxu0 %v785
      %799 = vmatpush.bf16.msra.mxu0 %v784
      %800 = vmatpush.bf16.msra.mxu0 %v783
      %801 = vmatpush.bf16.msra.mxu0 %v782
      %802 = vmatpush.bf16.msra.mxu0 %v781
      %803 = vmatpush.bf16.msra.mxu0 %v780
      %804 = vmatmul.bf16.gmra.mxu0 %v724
      %v805 = vpop.f32.mrf.mxu0
      %v806 = vadd.f32 0.0, %v805
      %v807 = vpop.f32.mrf.mxu0
      %v808 = vadd.f32 0.0, %v807
      %809 = vmatmul.bf16.gmra.mxu0 %v725
      %v810 = vpop.f32.mrf.mxu0
      %v811 = vadd.f32 0.0, %v810
      %v812 = vpop.f32.mrf.mxu0
      %v813 = vadd.f32 0.0, %v812
      %814 = vmatmul.bf16.gmra.mxu0 %v726
      %v815 = vpop.f32.mrf.mxu0
      %v816 = vadd.f32 0.0, %v815
      %v817 = vpop.f32.mrf.mxu0
      %v818 = vadd.f32 0.0, %v817
      %819 = vmatmul.bf16.gmra.mxu0 %v727
      %v820 = vpop.f32.mrf.mxu0
      %v821 = vadd.f32 0.0, %v820
      %v822 = vpop.f32.mrf.mxu0
      %v823 = vadd.f32 0.0, %v822
      %824 = vmatmul.bf16.gmra.mxu0 %v728
      %v825 = vpop.f32.mrf.mxu0
      %v826 = vadd.f32 0.0, %v825
      %v827 = vpop.f32.mrf.mxu0
      %v828 = vadd.f32 0.0, %v827
      %829 = vmatmul.bf16.gmra.mxu0 %v729
      %v830 = vpop.f32.mrf.mxu0
      %v831 = vadd.f32 0.0, %v830
      %v832 = vpop.f32.mrf.mxu0
      %v833 = vadd.f32 0.0, %v832
      %834 = vmatmul.bf16.gmra.mxu0 %v730
      %v835 = vpop.f32.mrf.mxu0
      %v836 = vadd.f32 0.0, %v835
      %v837 = vpop.f32.mrf.mxu0
      %v838 = vadd.f32 0.0, %v837
      %839 = vmatmul.bf16.gmra.mxu0 %v731
      %v840 = vpop.f32.mrf.mxu0
      %v841 = vadd.f32 0.0, %v840
      %v842 = vpop.f32.mrf.mxu0
      %v843 = vadd.f32 0.0, %v842
      %844 = vdwg.mxu0
      %v861 = vunpack.c.l.b16 %v611
      %v862 = vunpack.c.l.b16 %v612
      %v863 = vunpack.c.l.b16 %v613
      %v864 = vunpack.c.l.b16 %v614
      %v865 = vunpack.c.l.b16 %v615
      %v866 = vunpack.c.l.b16 %v616
      %v867 = vunpack.c.l.b16 %v617
      %v868 = vunpack.c.l.b16 %v618
      %v869 = vunpack.c.l.b16 %v619
      %v870 = vunpack.c.l.b16 %v620
      %v871 = vunpack.c.l.b16 %v621
      %v872 = vunpack.c.l.b16 %v622
      %v873 = vunpack.c.l.b16 %v623
      %v874 = vunpack.c.l.b16 %v624
      %v875 = vunpack.c.l.b16 %v625
      %v876 = vunpack.c.l.b16 %v626
      %v877 = vpack.c.b16 %v862, %v861
      %v878 = vpack.c.b16 %v864, %v863
      %v879 = vpack.c.b16 %v866, %v865
      %v880 = vpack.c.b16 %v868, %v867
      %v881 = vpack.c.b16 %v870, %v869
      %v882 = vpack.c.b16 %v872, %v871
      %v883 = vpack.c.b16 %v874, %v873
      %v884 = vpack.c.b16 %v876, %v875
      %893 = vmatpush.bf16.msra.mxu0 %v884
      %894 = vmatpush.bf16.msra.mxu0 %v883
      %895 = vmatpush.bf16.msra.mxu0 %v882
      %896 = vmatpush.bf16.msra.mxu0 %v881
      %897 = vmatpush.bf16.msra.mxu0 %v880
      %898 = vmatpush.bf16.msra.mxu0 %v879
      %899 = vmatpush.bf16.msra.mxu0 %v878
      %900 = vmatpush.bf16.msra.mxu0 %v877
      %901 = vmatmul.bf16.gmra.mxu0 %v603
      %v902 = vpop.f32.mrf.mxu0
      %v903 = vadd.f32 %v806, %v902
      %v904 = vpop.f32.mrf.mxu0
      %v905 = vadd.f32 %v808, %v904
      %906 = vmatmul.bf16.gmra.mxu0 %v604
      %v907 = vpop.f32.mrf.mxu0
      %v908 = vadd.f32 %v811, %v907
      %v909 = vpop.f32.mrf.mxu0
      %v910 = vadd.f32 %v813, %v909
      %911 = vmatmul.bf16.gmra.mxu0 %v605
      %v912 = vpop.f32.mrf.mxu0
      %v913 = vadd.f32 %v816, %v912
      %v914 = vpop.f32.mrf.mxu0
      %v915 = vadd.f32 %v818, %v914
      %916 = vmatmul.bf16.gmra.mxu0 %v606
      %v917 = vpop.f32.mrf.mxu0
      %v918 = vadd.f32 %v821, %v917
      %v919 = vpop.f32.mrf.mxu0
      %v920 = vadd.f32 %v823, %v919
      %921 = vmatmul.bf16.gmra.mxu0 %v607
      %v922 = vpop.f32.mrf.mxu0
      %v923 = vadd.f32 %v826, %v922
      %v924 = vpop.f32.mrf.mxu0
      %v925 = vadd.f32 %v828, %v924
      %926 = vmatmul.bf16.gmra.mxu0 %v608
      %v927 = vpop.f32.mrf.mxu0
      %v928 = vadd.f32 %v831, %v927
      %v929 = vpop.f32.mrf.mxu0
      %v930 = vadd.f32 %v833, %v929
      %931 = vmatmul.bf16.gmra.mxu0 %v609
      %v932 = vpop.f32.mrf.mxu0
      %v933 = vadd.f32 %v836, %v932
      %v934 = vpop.f32.mrf.mxu0
      %v935 = vadd.f32 %v838, %v934
      %936 = vmatmul.bf16.gmra.mxu0 %v610
      %v937 = vpop.f32.mrf.mxu0
      %v938 = vadd.f32 %v841, %v937
      %v939 = vpop.f32.mrf.mxu0
      %v940 = vadd.f32 %v843, %v939
      %941 = vdwg.mxu0
      %vm942 = vcmask 1045504
      %v943 = vrot.slane %v563, 2
      %v944 = vrot.slane %v564, 2
      %v945 = vsel %vm942, %v943, %v944
      %v946 = vrot.slane %v565, 2
      %v947 = vrot.slane %v566, 2
      %v948 = vsel %vm942, %v946, %v947
      %v949 = vrot.slane %v567, 2
      %v950 = vrot.slane %v568, 2
      %v951 = vsel %vm942, %v949, %v950
      %v952 = vrot.slane %v569, 2
      %v953 = vrot.slane %v570, 2
      %v954 = vsel %vm942, %v952, %v953
      %v955 = vrot.slane %v571, 2
      %v956 = vrot.slane %v572, 2
      %v957 = vsel %vm942, %v955, %v956
      %v958 = vrot.slane %v573, 2
      %v959 = vrot.slane %v574, 2
      %v960 = vsel %vm942, %v958, %v959
      %v961 = vrot.slane %v575, 2
      %v962 = vrot.slane %v576, 2
      %v963 = vsel %vm942, %v961, %v962
      %v964 = vrot.slane %v577, 2
      %v965 = vrot.slane %v578, 2
      %v966 = vsel %vm942, %v964, %v965
      %v967 = vrot.slane %v583, 2
      %v968 = vrot.slane %v584, 2
      %v969 = vsel %vm942, %v967, %v968
      %v970 = vrot.slane %v585, 2
      %v971 = vrot.slane %v586, 2
      %v972 = vsel %vm942, %v970, %v971
      %v973 = vrot.slane %v587, 2
      %v974 = vrot.slane %v588, 2
      %v975 = vsel %vm942, %v973, %v974
      %v976 = vrot.slane %v589, 2
      %v977 = vrot.slane %v590, 2
      %v978 = vsel %vm942, %v976, %v977
      %v979 = vrot.slane %v591, 2
      %v980 = vrot.slane %v592, 2
      %v981 = vsel %vm942, %v979, %v980
      %v982 = vrot.slane %v593, 2
      %v983 = vrot.slane %v594, 2
      %v984 = vsel %vm942, %v982, %v983
      %v985 = vrot.slane %v595, 2
      %v986 = vrot.slane %v596, 2
      %v987 = vsel %vm942, %v985, %v986
      %v988 = vrot.slane %v597, 2
      %v989 = vrot.slane %v598, 2
      %v990 = vsel %vm942, %v988, %v989
      %v1007 = vpack.c.bf16 %v948, %v945
      %v1008 = vpack.c.bf16 %v954, %v951
      %v1009 = vpack.c.bf16 %v960, %v957
      %v1010 = vpack.c.bf16 %v966, %v963
      %v1011 = vpack.c.bf16 %v972, %v969
      %v1012 = vpack.c.bf16 %v978, %v975
      %v1013 = vpack.c.bf16 %v984, %v981
      %v1014 = vpack.c.bf16 %v990, %v987
      %v1015 = vld [vmem:[%s2 + $0x80] sm:$0xf]
      %v1016 = vld [vmem:[%s2 + $0x84] sm:$0xf]
      %v1017 = vld [vmem:[%s2 + $0x88] sm:$0xf]
      %v1018 = vld [vmem:[%s2 + $0x8c] sm:$0xf]
      %v1019 = vld [vmem:[%s2 + $0x90] sm:$0xf]
      %v1020 = vld [vmem:[%s2 + $0x94] sm:$0xf]
      %v1021 = vld [vmem:[%s2 + $0x98] sm:$0xf]
      %v1022 = vld [vmem:[%s2 + $0x9c] sm:$0xf]
      %v1023 = vld [vmem:[%s2 + $0xa0] sm:$0xf]
      %v1024 = vld [vmem:[%s2 + $0xa4] sm:$0xf]
      %v1025 = vld [vmem:[%s2 + $0xa8] sm:$0xf]
      %v1026 = vld [vmem:[%s2 + $0xac] sm:$0xf]
      %v1027 = vld [vmem:[%s2 + $0xb0] sm:$0xf]
      %v1028 = vld [vmem:[%s2 + $0xb4] sm:$0xf]
      %v1029 = vld [vmem:[%s2 + $0xb8] sm:$0xf]
      %v1030 = vld [vmem:[%s2 + $0xbc] sm:$0xf]
      %v1047 = vunpack.c.l.b16 %v1015
      %v1048 = vunpack.c.l.b16 %v1016
      %v1049 = vunpack.c.l.b16 %v1017
      %v1050 = vunpack.c.l.b16 %v1018
      %v1051 = vunpack.c.l.b16 %v1019
      %v1052 = vunpack.c.l.b16 %v1020
      %v1053 = vunpack.c.l.b16 %v1021
      %v1054 = vunpack.c.l.b16 %v1022
      %v1055 = vunpack.c.l.b16 %v1023
      %v1056 = vunpack.c.l.b16 %v1024
      %v1057 = vunpack.c.l.b16 %v1025
      %v1058 = vunpack.c.l.b16 %v1026
      %v1059 = vunpack.c.l.b16 %v1027
      %v1060 = vunpack.c.l.b16 %v1028
      %v1061 = vunpack.c.l.b16 %v1029
      %v1062 = vunpack.c.l.b16 %v1030
      %v1063 = vpack.c.b16 %v1048, %v1047
      %v1064 = vpack.c.b16 %v1050, %v1049
      %v1065 = vpack.c.b16 %v1052, %v1051
      %v1066 = vpack.c.b16 %v1054, %v1053
      %v1067 = vpack.c.b16 %v1056, %v1055
      %v1068 = vpack.c.b16 %v1058, %v1057
      %v1069 = vpack.c.b16 %v1060, %v1059
      %v1070 = vpack.c.b16 %v1062, %v1061
      %1079 = vmatpush.bf16.msra.mxu0 %v1070
      %1080 = vmatpush.bf16.msra.mxu0 %v1069
      %1081 = vmatpush.bf16.msra.mxu0 %v1068
      %1082 = vmatpush.bf16.msra.mxu0 %v1067
      %1083 = vmatpush.bf16.msra.mxu0 %v1066
      %1084 = vmatpush.bf16.msra.mxu0 %v1065
      %1085 = vmatpush.bf16.msra.mxu0 %v1064
      %1086 = vmatpush.bf16.msra.mxu0 %v1063
      %1087 = vmatmul.bf16.gmra.mxu0 %v1007
      %v1088 = vpop.f32.mrf.mxu0
      %v1089 = vadd.f32 0.0, %v1088
      %v1090 = vpop.f32.mrf.mxu0
      %v1091 = vadd.f32 0.0, %v1090
      %1092 = vmatmul.bf16.gmra.mxu0 %v1008
      %v1093 = vpop.f32.mrf.mxu0
      %v1094 = vadd.f32 0.0, %v1093
      %v1095 = vpop.f32.mrf.mxu0
      %v1096 = vadd.f32 0.0, %v1095
      %1097 = vmatmul.bf16.gmra.mxu0 %v1009
      %v1098 = vpop.f32.mrf.mxu0
      %v1099 = vadd.f32 0.0, %v1098
      %v1100 = vpop.f32.mrf.mxu0
      %v1101 = vadd.f32 0.0, %v1100
      %1102 = vmatmul.bf16.gmra.mxu0 %v1010
      %v1103 = vpop.f32.mrf.mxu0
      %v1104 = vadd.f32 0.0, %v1103
      %v1105 = vpop.f32.mrf.mxu0
      %v1106 = vadd.f32 0.0, %v1105
      %1107 = vmatmul.bf16.gmra.mxu0 %v1011
      %v1108 = vpop.f32.mrf.mxu0
      %v1109 = vadd.f32 0.0, %v1108
      %v1110 = vpop.f32.mrf.mxu0
      %v1111 = vadd.f32 0.0, %v1110
      %1112 = vmatmul.bf16.gmra.mxu0 %v1012
      %v1113 = vpop.f32.mrf.mxu0
      %v1114 = vadd.f32 0.0, %v1113
      %v1115 = vpop.f32.mrf.mxu0
      %v1116 = vadd.f32 0.0, %v1115
      %1117 = vmatmul.bf16.gmra.mxu0 %v1013
      %v1118 = vpop.f32.mrf.mxu0
      %v1119 = vadd.f32 0.0, %v1118
      %v1120 = vpop.f32.mrf.mxu0
      %v1121 = vadd.f32 0.0, %v1120
      %1122 = vmatmul.bf16.gmra.mxu0 %v1014
      %v1123 = vpop.f32.mrf.mxu0
      %v1124 = vadd.f32 0.0, %v1123
      %v1125 = vpop.f32.mrf.mxu0
      %v1126 = vadd.f32 0.0, %v1125
      %1127 = vdwg.mxu0
      %v1128 = vadd.f32 %v903, %v1089
      %v1129 = vadd.f32 %v905, %v1091
      %v1130 = vadd.f32 %v908, %v1094
      %v1131 = vadd.f32 %v910, %v1096
      %v1132 = vadd.f32 %v913, %v1099
      %v1133 = vadd.f32 %v915, %v1101
      %v1134 = vadd.f32 %v918, %v1104
      %v1135 = vadd.f32 %v920, %v1106
      %v1136 = vadd.f32 %v923, %v1109
      %v1137 = vadd.f32 %v925, %v1111
      %v1138 = vadd.f32 %v928, %v1114
      %v1139 = vadd.f32 %v930, %v1116
      %v1140 = vadd.f32 %v933, %v1119
      %v1141 = vadd.f32 %v935, %v1121
      %v1142 = vadd.f32 %v938, %v1124
      %v1143 = vadd.f32 %v940, %v1126
      %v1144 = vpack.c.bf16 %v567, %v565
      %v1145 = vpack.c.bf16 %v571, %v569
      %v1146 = vpack.c.bf16 %v575, %v573
      %v1147 = vpack.c.bf16 %v579, %v577
      %v1148 = vpack.c.bf16 %v587, %v585
      %v1149 = vpack.c.bf16 %v591, %v589
      %v1150 = vpack.c.bf16 %v595, %v593
      %v1151 = vpack.c.bf16 %v599, %v597
      %v1152 = vld [vmem:[%s2 + $0xc0] sm:$0xf]
      %v1153 = vld [vmem:[%s2 + $0xc4] sm:$0xf]
      %v1154 = vld [vmem:[%s2 + $0xc8] sm:$0xf]
      %v1155 = vld [vmem:[%s2 + $0xcc] sm:$0xf]
      %v1156 = vld [vmem:[%s2 + $0xd0] sm:$0xf]
      %v1157 = vld [vmem:[%s2 + $0xd4] sm:$0xf]
      %v1158 = vld [vmem:[%s2 + $0xd8] sm:$0xf]
      %v1159 = vld [vmem:[%s2 + $0xdc] sm:$0xf]
      %v1160 = vld [vmem:[%s2 + $0xe0] sm:$0xf]
      %v1161 = vld [vmem:[%s2 + $0xe4] sm:$0xf]
      %v1162 = vld [vmem:[%s2 + $0xe8] sm:$0xf]
      %v1163 = vld [vmem:[%s2 + $0xec] sm:$0xf]
      %v1164 = vld [vmem:[%s2 + $0xf0] sm:$0xf]
      %v1165 = vld [vmem:[%s2 + $0xf4] sm:$0xf]
      %v1166 = vld [vmem:[%s2 + $0xf8] sm:$0xf]
      %v1167 = vld [vmem:[%s2 + $0xfc] sm:$0xf]
      %v1184 = vunpack.c.l.b16 %v1152
      %v1185 = vunpack.c.l.b16 %v1153
      %v1186 = vunpack.c.l.b16 %v1154
      %v1187 = vunpack.c.l.b16 %v1155
      %v1188 = vunpack.c.l.b16 %v1156
      %v1189 = vunpack.c.l.b16 %v1157
      %v1190 = vunpack.c.l.b16 %v1158
      %v1191 = vunpack.c.l.b16 %v1159
      %v1192 = vunpack.c.l.b16 %v1160
      %v1193 = vunpack.c.l.b16 %v1161
      %v1194 = vunpack.c.l.b16 %v1162
      %v1195 = vunpack.c.l.b16 %v1163
      %v1196 = vunpack.c.l.b16 %v1164
      %v1197 = vunpack.c.l.b16 %v1165
      %v1198 = vunpack.c.l.b16 %v1166
      %v1199 = vunpack.c.l.b16 %v1167
      %v1200 = vpack.c.b16 %v1185, %v1184
      %v1201 = vpack.c.b16 %v1187, %v1186
      %v1202 = vpack.c.b16 %v1189, %v1188
      %v1203 = vpack.c.b16 %v1191, %v1190
      %v1204 = vpack.c.b16 %v1193, %v1192
      %v1205 = vpack.c.b16 %v1195, %v1194
      %v1206 = vpack.c.b16 %v1197, %v1196
      %v1207 = vpack.c.b16 %v1199, %v1198
      %1216 = vmatpush.bf16.msra.mxu0 %v1207
      %1217 = vmatpush.bf16.msra.mxu0 %v1206
      %1218 = vmatpush.bf16.msra.mxu0 %v1205
      %1219 = vmatpush.bf16.msra.mxu0 %v1204
      %1220 = vmatpush.bf16.msra.mxu0 %v1203
      %1221 = vmatpush.bf16.msra.mxu0 %v1202
      %1222 = vmatpush.bf16.msra.mxu0 %v1201
      %1223 = vmatpush.bf16.msra.mxu0 %v1200
      %1224 = vmatmul.bf16.gmra.mxu0 %v1144
      %v1225 = vpop.f32.mrf.mxu0
      %v1226 = vadd.f32 0.0, %v1225
      %v1227 = vpop.f32.mrf.mxu0
      %v1228 = vadd.f32 0.0, %v1227
      %1229 = vmatmul.bf16.gmra.mxu0 %v1145
      %v1230 = vpop.f32.mrf.mxu0
      %v1231 = vadd.f32 0.0, %v1230
      %v1232 = vpop.f32.mrf.mxu0
      %v1233 = vadd.f32 0.0, %v1232
      %1234 = vmatmul.bf16.gmra.mxu0 %v1146
      %v1235 = vpop.f32.mrf.mxu0
      %v1236 = vadd.f32 0.0, %v1235
      %v1237 = vpop.f32.mrf.mxu0
      %v1238 = vadd.f32 0.0, %v1237
      %1239 = vmatmul.bf16.gmra.mxu0 %v1147
      %v1240 = vpop.f32.mrf.mxu0
      %v1241 = vadd.f32 0.0, %v1240
      %v1242 = vpop.f32.mrf.mxu0
      %v1243 = vadd.f32 0.0, %v1242
      %1244 = vmatmul.bf16.gmra.mxu0 %v1148
      %v1245 = vpop.f32.mrf.mxu0
      %v1246 = vadd.f32 0.0, %v1245
      %v1247 = vpop.f32.mrf.mxu0
      %v1248 = vadd.f32 0.0, %v1247
      %1249 = vmatmul.bf16.gmra.mxu0 %v1149
      %v1250 = vpop.f32.mrf.mxu0
      %v1251 = vadd.f32 0.0, %v1250
      %v1252 = vpop.f32.mrf.mxu0
      %v1253 = vadd.f32 0.0, %v1252
      %1254 = vmatmul.bf16.gmra.mxu0 %v1150
      %v1255 = vpop.f32.mrf.mxu0
      %v1256 = vadd.f32 0.0, %v1255
      %v1257 = vpop.f32.mrf.mxu0
      %v1258 = vadd.f32 0.0, %v1257
      %1259 = vmatmul.bf16.gmra.mxu0 %v1151
      %v1260 = vpop.f32.mrf.mxu0
      %v1261 = vadd.f32 0.0, %v1260
      %v1262 = vpop.f32.mrf.mxu0
      %v1263 = vadd.f32 0.0, %v1262
      %1264 = vdwg.mxu0
      %v1265 = vadd.f32 %v1128, %v1226
      %v1266 = vadd.f32 %v1129, %v1228
      %v1267 = vadd.f32 %v1130, %v1231
      %v1268 = vadd.f32 %v1131, %v1233
      %v1269 = vadd.f32 %v1132, %v1236
      %v1270 = vadd.f32 %v1133, %v1238
      %v1271 = vadd.f32 %v1134, %v1241
      %v1272 = vadd.f32 %v1135, %v1243
      %v1273 = vadd.f32 %v1136, %v1246
      %v1274 = vadd.f32 %v1137, %v1248
      %v1275 = vadd.f32 %v1138, %v1251
      %v1276 = vadd.f32 %v1139, %v1253
      %v1277 = vadd.f32 %v1140, %v1256
      %v1278 = vadd.f32 %v1141, %v1258
      %v1279 = vadd.f32 %v1142, %v1261
      %v1280 = vadd.f32 %v1143, %v1263
      %v1285 = vrot.slane %v579, 1
      %v1286 = vrot.slane %v580, 1
      %v1287 = vsel %vm659, %v1285, %v1286
      %v1288 = vrot.slane %v599, 1
      %v1289 = vrot.slane %v600, 1
      %v1290 = vsel %vm659, %v1288, %v1289
      %v1293 = vpack.c.bf16 %v668, %v665
      %v1294 = vpack.c.bf16 %v674, %v671
      %v1295 = vpack.c.bf16 %v680, %v677
      %v1296 = vpack.c.bf16 %v1287, %v683
      %v1297 = vpack.c.bf16 %v692, %v689
      %v1298 = vpack.c.bf16 %v698, %v695
      %v1299 = vpack.c.bf16 %v704, %v701
      %v1300 = vpack.c.bf16 %v1290, %v707
      %v1301 = vld [vmem:[%s2 + $0x100] sm:$0xf]
      %v1302 = vld [vmem:[%s2 + $0x104] sm:$0xf]
      %v1303 = vld [vmem:[%s2 + $0x108] sm:$0xf]
      %v1304 = vld [vmem:[%s2 + $0x10c] sm:$0xf]
      %v1305 = vld [vmem:[%s2 + $0x110] sm:$0xf]
      %v1306 = vld [vmem:[%s2 + $0x114] sm:$0xf]
      %v1307 = vld [vmem:[%s2 + $0x118] sm:$0xf]
      %v1308 = vld [vmem:[%s2 + $0x11c] sm:$0xf]
      %v1309 = vld [vmem:[%s2 + $0x120] sm:$0xf]
      %v1310 = vld [vmem:[%s2 + $0x124] sm:$0xf]
      %v1311 = vld [vmem:[%s2 + $0x128] sm:$0xf]
      %v1312 = vld [vmem:[%s2 + $0x12c] sm:$0xf]
      %v1313 = vld [vmem:[%s2 + $0x130] sm:$0xf]
      %v1314 = vld [vmem:[%s2 + $0x134] sm:$0xf]
      %v1315 = vld [vmem:[%s2 + $0x138] sm:$0xf]
      %v1316 = vld [vmem:[%s2 + $0x13c] sm:$0xf]
      %v1333 = vunpack.c.l.b16 %v1301
      %v1334 = vunpack.c.l.b16 %v1302
      %v1335 = vunpack.c.l.b16 %v1303
      %v1336 = vunpack.c.l.b16 %v1304
      %v1337 = vunpack.c.l.b16 %v1305
      %v1338 = vunpack.c.l.b16 %v1306
      %v1339 = vunpack.c.l.b16 %v1307
      %v1340 = vunpack.c.l.b16 %v1308
      %v1341 = vunpack.c.l.b16 %v1309
      %v1342 = vunpack.c.l.b16 %v1310
      %v1343 = vunpack.c.l.b16 %v1311
      %v1344 = vunpack.c.l.b16 %v1312
      %v1345 = vunpack.c.l.b16 %v1313
      %v1346 = vunpack.c.l.b16 %v1314
      %v1347 = vunpack.c.l.b16 %v1315
      %v1348 = vunpack.c.l.b16 %v1316
      %v1349 = vpack.c.b16 %v1334, %v1333
      %v1350 = vpack.c.b16 %v1336, %v1335
      %v1351 = vpack.c.b16 %v1338, %v1337
      %v1352 = vpack.c.b16 %v1340, %v1339
      %v1353 = vpack.c.b16 %v1342, %v1341
      %v1354 = vpack.c.b16 %v1344, %v1343
      %v1355 = vpack.c.b16 %v1346, %v1345
      %v1356 = vpack.c.b16 %v1348, %v1347
      %1365 = vmatpush.bf16.msra.mxu0 %v1356
      %1366 = vmatpush.bf16.msra.mxu0 %v1355
      %1367 = vmatpush.bf16.msra.mxu0 %v1354
      %1368 = vmatpush.bf16.msra.mxu0 %v1353
      %1369 = vmatpush.bf16.msra.mxu0 %v1352
      %1370 = vmatpush.bf16.msra.mxu0 %v1351
      %1371 = vmatpush.bf16.msra.mxu0 %v1350
      %1372 = vmatpush.bf16.msra.mxu0 %v1349
      %1373 = vmatmul.bf16.gmra.mxu0 %v1293
      %v1374 = vpop.f32.mrf.mxu0
      %v1375 = vadd.f32 0.0, %v1374
      %v1376 = vpop.f32.mrf.mxu0
      %v1377 = vadd.f32 0.0, %v1376
      %1378 = vmatmul.bf16.gmra.mxu0 %v1294
      %v1379 = vpop.f32.mrf.mxu0
      %v1380 = vadd.f32 0.0, %v1379
      %v1381 = vpop.f32.mrf.mxu0
      %v1382 = vadd.f32 0.0, %v1381
      %1383 = vmatmul.bf16.gmra.mxu0 %v1295
      %v1384 = vpop.f32.mrf.mxu0
      %v1385 = vadd.f32 0.0, %v1384
      %v1386 = vpop.f32.mrf.mxu0
      %v1387 = vadd.f32 0.0, %v1386
      %1388 = vmatmul.bf16.gmra.mxu0 %v1296
      %v1389 = vpop.f32.mrf.mxu0
      %v1390 = vadd.f32 0.0, %v1389
      %v1391 = vpop.f32.mrf.mxu0
      %v1392 = vadd.f32 0.0, %v1391
      %1393 = vmatmul.bf16.gmra.mxu0 %v1297
      %v1394 = vpop.f32.mrf.mxu0
      %v1395 = vadd.f32 0.0, %v1394
      %v1396 = vpop.f32.mrf.mxu0
      %v1397 = vadd.f32 0.0, %v1396
      %1398 = vmatmul.bf16.gmra.mxu0 %v1298
      %v1399 = vpop.f32.mrf.mxu0
      %v1400 = vadd.f32 0.0, %v1399
      %v1401 = vpop.f32.mrf.mxu0
      %v1402 = vadd.f32 0.0, %v1401
      %1403 = vmatmul.bf16.gmra.mxu0 %v1299
      %v1404 = vpop.f32.mrf.mxu0
      %v1405 = vadd.f32 0.0, %v1404
      %v1406 = vpop.f32.mrf.mxu0
      %v1407 = vadd.f32 0.0, %v1406
      %1408 = vmatmul.bf16.gmra.mxu0 %v1300
      %v1409 = vpop.f32.mrf.mxu0
      %v1410 = vadd.f32 0.0, %v1409
      %v1411 = vpop.f32.mrf.mxu0
      %v1412 = vadd.f32 0.0, %v1411
      %1413 = vdwg.mxu0
      %v1414 = vadd.f32 %v1265, %v1375
      %v1415 = vadd.f32 %v1266, %v1377
      %v1416 = vadd.f32 %v1267, %v1380
      %v1417 = vadd.f32 %v1268, %v1382
      %v1418 = vadd.f32 %v1269, %v1385
      %v1419 = vadd.f32 %v1270, %v1387
      %v1420 = vadd.f32 %v1271, %v1390
      %v1421 = vadd.f32 %v1272, %v1392
      %v1422 = vadd.f32 %v1273, %v1395
      %v1423 = vadd.f32 %v1274, %v1397
      %v1424 = vadd.f32 %v1275, %v1400
      %v1425 = vadd.f32 %v1276, %v1402
      %v1426 = vadd.f32 %v1277, %v1405
      %v1427 = vadd.f32 %v1278, %v1407
      %v1428 = vadd.f32 %v1279, %v1410
      %v1429 = vadd.f32 %v1280, %v1412
      %v1430 = vrot.slane %v579, 2
      %v1431 = vrot.slane %v580, 2
      %v1432 = vsel %vm942, %v1430, %v1431
      %v1433 = vrot.slane %v599, 2
      %v1434 = vrot.slane %v600, 2
      %v1435 = vsel %vm942, %v1433, %v1434
      %v1438 = vpack.c.bf16 %v951, %v948
      %v1439 = vpack.c.bf16 %v957, %v954
      %v1440 = vpack.c.bf16 %v963, %v960
      %v1441 = vpack.c.bf16 %v1432, %v966
      %v1442 = vpack.c.bf16 %v975, %v972
      %v1443 = vpack.c.bf16 %v981, %v978
      %v1444 = vpack.c.bf16 %v987, %v984
      %v1445 = vpack.c.bf16 %v1435, %v990
      %v1446 = vld [vmem:[%s2 + $0x140] sm:$0xf]
      %v1447 = vld [vmem:[%s2 + $0x144] sm:$0xf]
      %v1448 = vld [vmem:[%s2 + $0x148] sm:$0xf]
      %v1449 = vld [vmem:[%s2 + $0x14c] sm:$0xf]
      %v1450 = vld [vmem:[%s2 + $0x150] sm:$0xf]
      %v1451 = vld [vmem:[%s2 + $0x154] sm:$0xf]
      %v1452 = vld [vmem:[%s2 + $0x158] sm:$0xf]
      %v1453 = vld [vmem:[%s2 + $0x15c] sm:$0xf]
      %v1454 = vld [vmem:[%s2 + $0x160] sm:$0xf]
      %v1455 = vld [vmem:[%s2 + $0x164] sm:$0xf]
      %v1456 = vld [vmem:[%s2 + $0x168] sm:$0xf]
      %v1457 = vld [vmem:[%s2 + $0x16c] sm:$0xf]
      %v1458 = vld [vmem:[%s2 + $0x170] sm:$0xf]
      %v1459 = vld [vmem:[%s2 + $0x174] sm:$0xf]
      %v1460 = vld [vmem:[%s2 + $0x178] sm:$0xf]
      %v1461 = vld [vmem:[%s2 + $0x17c] sm:$0xf]
      %v1478 = vunpack.c.l.b16 %v1446
      %v1479 = vunpack.c.l.b16 %v1447
      %v1480 = vunpack.c.l.b16 %v1448
      %v1481 = vunpack.c.l.b16 %v1449
      %v1482 = vunpack.c.l.b16 %v1450
      %v1483 = vunpack.c.l.b16 %v1451
      %v1484 = vunpack.c.l.b16 %v1452
      %v1485 = vunpack.c.l.b16 %v1453
      %v1486 = vunpack.c.l.b16 %v1454
      %v1487 = vunpack.c.l.b16 %v1455
      %v1488 = vunpack.c.l.b16 %v1456
      %v1489 = vunpack.c.l.b16 %v1457
      %v1490 = vunpack.c.l.b16 %v1458
      %v1491 = vunpack.c.l.b16 %v1459
      %v1492 = vunpack.c.l.b16 %v1460
      %v1493 = vunpack.c.l.b16 %v1461
      %v1494 = vpack.c.b16 %v1479, %v1478
      %v1495 = vpack.c.b16 %v1481, %v1480
      %v1496 = vpack.c.b16 %v1483, %v1482
      %v1497 = vpack.c.b16 %v1485, %v1484
      %v1498 = vpack.c.b16 %v1487, %v1486
      %v1499 = vpack.c.b16 %v1489, %v1488
      %v1500 = vpack.c.b16 %v1491, %v1490
      %v1501 = vpack.c.b16 %v1493, %v1492
      %1510 = vmatpush.bf16.msra.mxu0 %v1501
      %1511 = vmatpush.bf16.msra.mxu0 %v1500
      %1512 = vmatpush.bf16.msra.mxu0 %v1499
      %1513 = vmatpush.bf16.msra.mxu0 %v1498
      %1514 = vmatpush.bf16.msra.mxu0 %v1497
      %1515 = vmatpush.bf16.msra.mxu0 %v1496
      %1516 = vmatpush.bf16.msra.mxu0 %v1495
      %1517 = vmatpush.bf16.msra.mxu0 %v1494
      %1518 = vmatmul.bf16.gmra.mxu0 %v1438
      %v1519 = vpop.f32.mrf.mxu0
      %v1520 = vadd.f32 0.0, %v1519
      %v1521 = vpop.f32.mrf.mxu0
      %v1522 = vadd.f32 0.0, %v1521
      %1523 = vmatmul.bf16.gmra.mxu0 %v1439
      %v1524 = vpop.f32.mrf.mxu0
      %v1525 = vadd.f32 0.0, %v1524
      %v1526 = vpop.f32.mrf.mxu0
      %v1527 = vadd.f32 0.0, %v1526
      %1528 = vmatmul.bf16.gmra.mxu0 %v1440
      %v1529 = vpop.f32.mrf.mxu0
      %v1530 = vadd.f32 0.0, %v1529
      %v1531 = vpop.f32.mrf.mxu0
      %v1532 = vadd.f32 0.0, %v1531
      %1533 = vmatmul.bf16.gmra.mxu0 %v1441
      %v1534 = vpop.f32.mrf.mxu0
      %v1535 = vadd.f32 0.0, %v1534
      %v1536 = vpop.f32.mrf.mxu0
      %v1537 = vadd.f32 0.0, %v1536
      %1538 = vmatmul.bf16.gmra.mxu0 %v1442
      %v1539 = vpop.f32.mrf.mxu0
      %v1540 = vadd.f32 0.0, %v1539
      %v1541 = vpop.f32.mrf.mxu0
      %v1542 = vadd.f32 0.0, %v1541
      %1543 = vmatmul.bf16.gmra.mxu0 %v1443
      %v1544 = vpop.f32.mrf.mxu0
      %v1545 = vadd.f32 0.0, %v1544
      %v1546 = vpop.f32.mrf.mxu0
      %v1547 = vadd.f32 0.0, %v1546
      %1548 = vmatmul.bf16.gmra.mxu0 %v1444
      %v1549 = vpop.f32.mrf.mxu0
      %v1550 = vadd.f32 0.0, %v1549
      %v1551 = vpop.f32.mrf.mxu0
      %v1552 = vadd.f32 0.0, %v1551
      %1553 = vmatmul.bf16.gmra.mxu0 %v1445
      %v1554 = vpop.f32.mrf.mxu0
      %v1555 = vadd.f32 0.0, %v1554
      %v1556 = vpop.f32.mrf.mxu0
      %v1557 = vadd.f32 0.0, %v1556
      %1558 = vdwg.mxu0
      %v1559 = vadd.f32 %v1414, %v1520
      %v1560 = vadd.f32 %v1415, %v1522
      %v1561 = vadd.f32 %v1416, %v1525
      %v1562 = vadd.f32 %v1417, %v1527
      %v1563 = vadd.f32 %v1418, %v1530
      %v1564 = vadd.f32 %v1419, %v1532
      %v1565 = vadd.f32 %v1420, %v1535
      %v1566 = vadd.f32 %v1421, %v1537
      %v1567 = vadd.f32 %v1422, %v1540
      %v1568 = vadd.f32 %v1423, %v1542
      %v1569 = vadd.f32 %v1424, %v1545
      %v1570 = vadd.f32 %v1425, %v1547
      %v1571 = vadd.f32 %v1426, %v1550
      %v1572 = vadd.f32 %v1427, %v1552
      %v1573 = vadd.f32 %v1428, %v1555
      %v1574 = vadd.f32 %v1429, %v1557
      %v1575 = vpack.c.bf16 %v581, %v579
      %v1576 = vpack.c.bf16 %v601, %v599
      %v1577 = vld [vmem:[%s2 + $0x180] sm:$0xf]
      %v1578 = vld [vmem:[%s2 + $0x184] sm:$0xf]
      %v1579 = vld [vmem:[%s2 + $0x188] sm:$0xf]
      %v1580 = vld [vmem:[%s2 + $0x18c] sm:$0xf]
      %v1581 = vld [vmem:[%s2 + $0x190] sm:$0xf]
      %v1582 = vld [vmem:[%s2 + $0x194] sm:$0xf]
      %v1583 = vld [vmem:[%s2 + $0x198] sm:$0xf]
      %v1584 = vld [vmem:[%s2 + $0x19c] sm:$0xf]
      %v1585 = vld [vmem:[%s2 + $0x1a0] sm:$0xf]
      %v1586 = vld [vmem:[%s2 + $0x1a4] sm:$0xf]
      %v1587 = vld [vmem:[%s2 + $0x1a8] sm:$0xf]
      %v1588 = vld [vmem:[%s2 + $0x1ac] sm:$0xf]
      %v1589 = vld [vmem:[%s2 + $0x1b0] sm:$0xf]
      %v1590 = vld [vmem:[%s2 + $0x1b4] sm:$0xf]
      %v1591 = vld [vmem:[%s2 + $0x1b8] sm:$0xf]
      %v1592 = vld [vmem:[%s2 + $0x1bc] sm:$0xf]
      %v1609 = vunpack.c.l.b16 %v1577
      %v1610 = vunpack.c.l.b16 %v1578
      %v1611 = vunpack.c.l.b16 %v1579
      %v1612 = vunpack.c.l.b16 %v1580
      %v1613 = vunpack.c.l.b16 %v1581
      %v1614 = vunpack.c.l.b16 %v1582
      %v1615 = vunpack.c.l.b16 %v1583
      %v1616 = vunpack.c.l.b16 %v1584
      %v1617 = vunpack.c.l.b16 %v1585
      %v1618 = vunpack.c.l.b16 %v1586
      %v1619 = vunpack.c.l.b16 %v1587
      %v1620 = vunpack.c.l.b16 %v1588
      %v1621 = vunpack.c.l.b16 %v1589
      %v1622 = vunpack.c.l.b16 %v1590
      %v1623 = vunpack.c.l.b16 %v1591
      %v1624 = vunpack.c.l.b16 %v1592
      %v1625 = vpack.c.b16 %v1610, %v1609
      %v1626 = vpack.c.b16 %v1612, %v1611
      %v1627 = vpack.c.b16 %v1614, %v1613
      %v1628 = vpack.c.b16 %v1616, %v1615
      %v1629 = vpack.c.b16 %v1618, %v1617
      %v1630 = vpack.c.b16 %v1620, %v1619
      %v1631 = vpack.c.b16 %v1622, %v1621
      %v1632 = vpack.c.b16 %v1624, %v1623
      %1641 = vmatpush.bf16.msra.mxu0 %v1632
      %1642 = vmatpush.bf16.msra.mxu0 %v1631
      %1643 = vmatpush.bf16.msra.mxu0 %v1630
      %1644 = vmatpush.bf16.msra.mxu0 %v1629
      %1645 = vmatpush.bf16.msra.mxu0 %v1628
      %1646 = vmatpush.bf16.msra.mxu0 %v1627
      %1647 = vmatpush.bf16.msra.mxu0 %v1626
      %1648 = vmatpush.bf16.msra.mxu0 %v1625
      %1649 = vmatmul.bf16.gmra.mxu0 %v604
      %v1650 = vpop.f32.mrf.mxu0
      %v1651 = vadd.f32 0.0, %v1650
      %v1652 = vpop.f32.mrf.mxu0
      %v1653 = vadd.f32 0.0, %v1652
      %1654 = vmatmul.bf16.gmra.mxu0 %v605
      %v1655 = vpop.f32.mrf.mxu0
      %v1656 = vadd.f32 0.0, %v1655
      %v1657 = vpop.f32.mrf.mxu0
      %v1658 = vadd.f32 0.0, %v1657
      %1659 = vmatmul.bf16.gmra.mxu0 %v606
      %v1660 = vpop.f32.mrf.mxu0
      %v1661 = vadd.f32 0.0, %v1660
      %v1662 = vpop.f32.mrf.mxu0
      %v1663 = vadd.f32 0.0, %v1662
      %1664 = vmatmul.bf16.gmra.mxu0 %v1575
      %v1665 = vpop.f32.mrf.mxu0
      %v1666 = vadd.f32 0.0, %v1665
      %v1667 = vpop.f32.mrf.mxu0
      %v1668 = vadd.f32 0.0, %v1667
      %1669 = vmatmul.bf16.gmra.mxu0 %v608
      %v1670 = vpop.f32.mrf.mxu0
      %v1671 = vadd.f32 0.0, %v1670
      %v1672 = vpop.f32.mrf.mxu0
      %v1673 = vadd.f32 0.0, %v1672
      %1674 = vmatmul.bf16.gmra.mxu0 %v609
      %v1675 = vpop.f32.mrf.mxu0
      %v1676 = vadd.f32 0.0, %v1675
      %v1677 = vpop.f32.mrf.mxu0
      %v1678 = vadd.f32 0.0, %v1677
      %1679 = vmatmul.bf16.gmra.mxu0 %v610
      %v1680 = vpop.f32.mrf.mxu0
      %v1681 = vadd.f32 0.0, %v1680
      %v1682 = vpop.f32.mrf.mxu0
      %v1683 = vadd.f32 0.0, %v1682
      %1684 = vmatmul.bf16.gmra.mxu0 %v1576
      %v1685 = vpop.f32.mrf.mxu0
      %v1686 = vadd.f32 0.0, %v1685
      %v1687 = vpop.f32.mrf.mxu0
      %v1688 = vadd.f32 0.0, %v1687
      %1689 = vdwg.mxu0
      %v1690 = vadd.f32 %v1559, %v1651
      %v1691 = vadd.f32 %v1560, %v1653
      %v1692 = vadd.f32 %v1561, %v1656
      %v1693 = vadd.f32 %v1562, %v1658
      %v1694 = vadd.f32 %v1563, %v1661
      %v1695 = vadd.f32 %v1564, %v1663
      %v1696 = vadd.f32 %v1565, %v1666
      %v1697 = vadd.f32 %v1566, %v1668
      %v1698 = vadd.f32 %v1567, %v1671
      %v1699 = vadd.f32 %v1568, %v1673
      %v1700 = vadd.f32 %v1569, %v1676
      %v1701 = vadd.f32 %v1570, %v1678
      %v1702 = vadd.f32 %v1571, %v1681
      %v1703 = vadd.f32 %v1572, %v1683
      %v1704 = vadd.f32 %v1573, %v1686
      %v1705 = vadd.f32 %v1574, %v1688
      %v1710 = vrot.slane %v581, 1
      %v1711 = vrot.slane %v582, 1
      %v1712 = vsel %vm659, %v1710, %v1711
      %v1713 = vrot.slane %v601, 1
      %v1714 = vrot.slane %v602, 1
      %v1715 = vsel %vm659, %v1713, %v1714
      %v1718 = vpack.c.bf16 %v1712, %v1287
      %v1719 = vpack.c.bf16 %v1715, %v1290
      %v1720 = vld [vmem:[%s2 + $0x1c0] sm:$0xf]
      %v1721 = vld [vmem:[%s2 + $0x1c4] sm:$0xf]
      %v1722 = vld [vmem:[%s2 + $0x1c8] sm:$0xf]
      %v1723 = vld [vmem:[%s2 + $0x1cc] sm:$0xf]
      %v1724 = vld [vmem:[%s2 + $0x1d0] sm:$0xf]
      %v1725 = vld [vmem:[%s2 + $0x1d4] sm:$0xf]
      %v1726 = vld [vmem:[%s2 + $0x1d8] sm:$0xf]
      %v1727 = vld [vmem:[%s2 + $0x1dc] sm:$0xf]
      %v1728 = vld [vmem:[%s2 + $0x1e0] sm:$0xf]
      %v1729 = vld [vmem:[%s2 + $0x1e4] sm:$0xf]
      %v1730 = vld [vmem:[%s2 + $0x1e8] sm:$0xf]
      %v1731 = vld [vmem:[%s2 + $0x1ec] sm:$0xf]
      %v1732 = vld [vmem:[%s2 + $0x1f0] sm:$0xf]
      %v1733 = vld [vmem:[%s2 + $0x1f4] sm:$0xf]
      %v1734 = vld [vmem:[%s2 + $0x1f8] sm:$0xf]
      %v1735 = vld [vmem:[%s2 + $0x1fc] sm:$0xf]
      %v1752 = vunpack.c.l.b16 %v1720
      %v1753 = vunpack.c.l.b16 %v1721
      %v1754 = vunpack.c.l.b16 %v1722
      %v1755 = vunpack.c.l.b16 %v1723
      %v1756 = vunpack.c.l.b16 %v1724
      %v1757 = vunpack.c.l.b16 %v1725
      %v1758 = vunpack.c.l.b16 %v1726
      %v1759 = vunpack.c.l.b16 %v1727
      %v1760 = vunpack.c.l.b16 %v1728
      %v1761 = vunpack.c.l.b16 %v1729
      %v1762 = vunpack.c.l.b16 %v1730
      %v1763 = vunpack.c.l.b16 %v1731
      %v1764 = vunpack.c.l.b16 %v1732
      %v1765 = vunpack.c.l.b16 %v1733
      %v1766 = vunpack.c.l.b16 %v1734
      %v1767 = vunpack.c.l.b16 %v1735
      %v1768 = vpack.c.b16 %v1753, %v1752
      %v1769 = vpack.c.b16 %v1755, %v1754
      %v1770 = vpack.c.b16 %v1757, %v1756
      %v1771 = vpack.c.b16 %v1759, %v1758
      %v1772 = vpack.c.b16 %v1761, %v1760
      %v1773 = vpack.c.b16 %v1763, %v1762
      %v1774 = vpack.c.b16 %v1765, %v1764
      %v1775 = vpack.c.b16 %v1767, %v1766
      %1784 = vmatpush.bf16.msra.mxu0 %v1775
      %1785 = vmatpush.bf16.msra.mxu0 %v1774
      %1786 = vmatpush.bf16.msra.mxu0 %v1773
      %1787 = vmatpush.bf16.msra.mxu0 %v1772
      %1788 = vmatpush.bf16.msra.mxu0 %v1771
      %1789 = vmatpush.bf16.msra.mxu0 %v1770
      %1790 = vmatpush.bf16.msra.mxu0 %v1769
      %1791 = vmatpush.bf16.msra.mxu0 %v1768
      %1792 = vmatmul.bf16.gmra.mxu0 %v725
      %v1793 = vpop.f32.mrf.mxu0
      %v1794 = vadd.f32 0.0, %v1793
      %v1795 = vpop.f32.mrf.mxu0
      %v1796 = vadd.f32 0.0, %v1795
      %1797 = vmatmul.bf16.gmra.mxu0 %v726
      %v1798 = vpop.f32.mrf.mxu0
      %v1799 = vadd.f32 0.0, %v1798
      %v1800 = vpop.f32.mrf.mxu0
      %v1801 = vadd.f32 0.0, %v1800
      %1802 = vmatmul.bf16.gmra.mxu0 %v727
      %v1803 = vpop.f32.mrf.mxu0
      %v1804 = vadd.f32 0.0, %v1803
      %v1805 = vpop.f32.mrf.mxu0
      %v1806 = vadd.f32 0.0, %v1805
      %1807 = vmatmul.bf16.gmra.mxu0 %v1718
      %v1808 = vpop.f32.mrf.mxu0
      %v1809 = vadd.f32 0.0, %v1808
      %v1810 = vpop.f32.mrf.mxu0
      %v1811 = vadd.f32 0.0, %v1810
      %1812 = vmatmul.bf16.gmra.mxu0 %v729
      %v1813 = vpop.f32.mrf.mxu0
      %v1814 = vadd.f32 0.0, %v1813
      %v1815 = vpop.f32.mrf.mxu0
      %v1816 = vadd.f32 0.0, %v1815
      %1817 = vmatmul.bf16.gmra.mxu0 %v730
      %v1818 = vpop.f32.mrf.mxu0
      %v1819 = vadd.f32 0.0, %v1818
      %v1820 = vpop.f32.mrf.mxu0
      %v1821 = vadd.f32 0.0, %v1820
      %1822 = vmatmul.bf16.gmra.mxu0 %v731
      %v1823 = vpop.f32.mrf.mxu0
      %v1824 = vadd.f32 0.0, %v1823
      %v1825 = vpop.f32.mrf.mxu0
      %v1826 = vadd.f32 0.0, %v1825
      %1827 = vmatmul.bf16.gmra.mxu0 %v1719
      %v1828 = vpop.f32.mrf.mxu0
      %v1829 = vadd.f32 0.0, %v1828
      %v1830 = vpop.f32.mrf.mxu0
      %v1831 = vadd.f32 0.0, %v1830
      %1832 = vdwg.mxu0
      %v1833 = vadd.f32 %v1690, %v1794
      %v1834 = vadd.f32 %v1691, %v1796
      %v1835 = vadd.f32 %v1692, %v1799
      %v1836 = vadd.f32 %v1693, %v1801
      %v1837 = vadd.f32 %v1694, %v1804
      %v1838 = vadd.f32 %v1695, %v1806
      %v1839 = vadd.f32 %v1696, %v1809
      %v1840 = vadd.f32 %v1697, %v1811
      %v1841 = vadd.f32 %v1698, %v1814
      %v1842 = vadd.f32 %v1699, %v1816
      %v1843 = vadd.f32 %v1700, %v1819
      %v1844 = vadd.f32 %v1701, %v1821
      %v1845 = vadd.f32 %v1702, %v1824
      %v1846 = vadd.f32 %v1703, %v1826
      %v1847 = vadd.f32 %v1704, %v1829
      %v1848 = vadd.f32 %v1705, %v1831
      %v1849 = vrot.slane %v581, 2
      %v1850 = vrot.slane %v582, 2
      %v1851 = vsel %vm942, %v1849, %v1850
      %v1852 = vrot.slane %v601, 2
      %v1853 = vrot.slane %v602, 2
      %v1854 = vsel %vm942, %v1852, %v1853
      %v1857 = vpack.c.bf16 %v1851, %v1432
      %v1858 = vpack.c.bf16 %v1854, %v1435
      %v1859 = vld [vmem:[%s2 + $0x200] sm:$0xf]
      %v1860 = vld [vmem:[%s2 + $0x204] sm:$0xf]
      %v1861 = vld [vmem:[%s2 + $0x208] sm:$0xf]
      %v1862 = vld [vmem:[%s2 + $0x20c] sm:$0xf]
      %v1863 = vld [vmem:[%s2 + $0x210] sm:$0xf]
      %v1864 = vld [vmem:[%s2 + $0x214] sm:$0xf]
      %v1865 = vld [vmem:[%s2 + $0x218] sm:$0xf]
      %v1866 = vld [vmem:[%s2 + $0x21c] sm:$0xf]
      %v1867 = vld [vmem:[%s2 + $0x220] sm:$0xf]
      %v1868 = vld [vmem:[%s2 + $0x224] sm:$0xf]
      %v1869 = vld [vmem:[%s2 + $0x228] sm:$0xf]
      %v1870 = vld [vmem:[%s2 + $0x22c] sm:$0xf]
      %v1871 = vld [vmem:[%s2 + $0x230] sm:$0xf]
      %v1872 = vld [vmem:[%s2 + $0x234] sm:$0xf]
      %v1873 = vld [vmem:[%s2 + $0x238] sm:$0xf]
      %v1874 = vld [vmem:[%s2 + $0x23c] sm:$0xf]
      %v1891 = vunpack.c.l.b16 %v1859
      %v1892 = vunpack.c.l.b16 %v1860
      %v1893 = vunpack.c.l.b16 %v1861
      %v1894 = vunpack.c.l.b16 %v1862
      %v1895 = vunpack.c.l.b16 %v1863
      %v1896 = vunpack.c.l.b16 %v1864
      %v1897 = vunpack.c.l.b16 %v1865
      %v1898 = vunpack.c.l.b16 %v1866
      %v1899 = vunpack.c.l.b16 %v1867
      %v1900 = vunpack.c.l.b16 %v1868
      %v1901 = vunpack.c.l.b16 %v1869
      %v1902 = vunpack.c.l.b16 %v1870
      %v1903 = vunpack.c.l.b16 %v1871
      %v1904 = vunpack.c.l.b16 %v1872
      %v1905 = vunpack.c.l.b16 %v1873
      %v1906 = vunpack.c.l.b16 %v1874
      %v1907 = vpack.c.b16 %v1892, %v1891
      %v1908 = vpack.c.b16 %v1894, %v1893
      %v1909 = vpack.c.b16 %v1896, %v1895
      %v1910 = vpack.c.b16 %v1898, %v1897
      %v1911 = vpack.c.b16 %v1900, %v1899
      %v1912 = vpack.c.b16 %v1902, %v1901
      %v1913 = vpack.c.b16 %v1904, %v1903
      %v1914 = vpack.c.b16 %v1906, %v1905
      %1923 = vmatpush.bf16.msra.mxu0 %v1914
      %1924 = vmatpush.bf16.msra.mxu0 %v1913
      %1925 = vmatpush.bf16.msra.mxu0 %v1912
      %1926 = vmatpush.bf16.msra.mxu0 %v1911
      %1927 = vmatpush.bf16.msra.mxu0 %v1910
      %1928 = vmatpush.bf16.msra.mxu0 %v1909
      %1929 = vmatpush.bf16.msra.mxu0 %v1908
      %1930 = vmatpush.bf16.msra.mxu0 %v1907
      %1931 = vmatmul.bf16.gmra.mxu0 %v1008
      %v1932 = vpop.f32.mrf.mxu0
      %v1933 = vadd.f32 0.0, %v1932
      %v1934 = vpop.f32.mrf.mxu0
      %v1935 = vadd.f32 0.0, %v1934
      %1936 = vmatmul.bf16.gmra.mxu0 %v1009
      %v1937 = vpop.f32.mrf.mxu0
      %v1938 = vadd.f32 0.0, %v1937
      %v1939 = vpop.f32.mrf.mxu0
      %v1940 = vadd.f32 0.0, %v1939
      %1941 = vmatmul.bf16.gmra.mxu0 %v1010
      %v1942 = vpop.f32.mrf.mxu0
      %v1943 = vadd.f32 0.0, %v1942
      %v1944 = vpop.f32.mrf.mxu0
      %v1945 = vadd.f32 0.0, %v1944
      %1946 = vmatmul.bf16.gmra.mxu0 %v1857
      %v1947 = vpop.f32.mrf.mxu0
      %v1948 = vadd.f32 0.0, %v1947
      %v1949 = vpop.f32.mrf.mxu0
      %v1950 = vadd.f32 0.0, %v1949
      %1951 = vmatmul.bf16.gmra.mxu0 %v1012
      %v1952 = vpop.f32.mrf.mxu0
      %v1953 = vadd.f32 0.0, %v1952
      %v1954 = vpop.f32.mrf.mxu0
      %v1955 = vadd.f32 0.0, %v1954
      %1956 = vmatmul.bf16.gmra.mxu0 %v1013
      %v1957 = vpop.f32.mrf.mxu0
      %v1958 = vadd.f32 0.0, %v1957
      %v1959 = vpop.f32.mrf.mxu0
      %v1960 = vadd.f32 0.0, %v1959
      %1961 = vmatmul.bf16.gmra.mxu0 %v1014
      %v1962 = vpop.f32.mrf.mxu0
      %v1963 = vadd.f32 0.0, %v1962
      %v1964 = vpop.f32.mrf.mxu0
      %v1965 = vadd.f32 0.0, %v1964
      %1966 = vmatmul.bf16.gmra.mxu0 %v1858
      %v1967 = vpop.f32.mrf.mxu0
      %v1968 = vadd.f32 0.0, %v1967
      %v1969 = vpop.f32.mrf.mxu0
      %v1970 = vadd.f32 0.0, %v1969
      %1971 = vdwg.mxu0
      %v1972 = vadd.f32 %v1833, %v1933
      %v1973 = vadd.f32 %v1834, %v1935
      %v1974 = vadd.f32 %v1835, %v1938
      %v1975 = vadd.f32 %v1836, %v1940
      %v1976 = vadd.f32 %v1837, %v1943
      %v1977 = vadd.f32 %v1838, %v1945
      %v1978 = vadd.f32 %v1839, %v1948
      %v1979 = vadd.f32 %v1840, %v1950
      %v1980 = vadd.f32 %v1841, %v1953
      %v1981 = vadd.f32 %v1842, %v1955
      %v1982 = vadd.f32 %v1843, %v1958
      %v1983 = vadd.f32 %v1844, %v1960
      %v1984 = vadd.f32 %v1845, %v1963
      %v1985 = vadd.f32 %v1846, %v1965
      %v1986 = vadd.f32 %v1847, %v1968
      %v1987 = vadd.f32 %v1848, %v1970
      %v1988 = vld [vmem:[%s381] sm:$0xf]
      %v1989 = vld [vmem:[%s381 + $0x4] sm:$0xf]
      %v1990 = vld [vmem:[%s381 + $0x8] sm:$0xf]
      %v1991 = vld [vmem:[%s381 + $0xc] sm:$0xf]
      %v1992 = vld [vmem:[%s381 + $0x10] sm:$0xf]
      %v1993 = vld [vmem:[%s381 + $0x14] sm:$0xf]
      %v1994 = vld [vmem:[%s381 + $0x18] sm:$0xf]
      %v1995 = vld [vmem:[%s381 + $0x1c] sm:$0xf]
      %v1996 = vunpack.c.l.bf16 %v1988
      %v1997 = vunpack.c.l.bf16 %v1989
      %v1998 = vunpack.c.l.bf16 %v1990
      %v1999 = vunpack.c.l.bf16 %v1991
      %v2000 = vunpack.c.l.bf16 %v1992
      %v2001 = vunpack.c.l.bf16 %v1993
      %v2002 = vunpack.c.l.bf16 %v1994
      %v2003 = vunpack.c.l.bf16 %v1995
      %v2004 = vmul.f32 %v1972, %v1996
      %v2005 = vmul.f32 %v1973, %v1997
      %v2006 = vmul.f32 %v1974, %v1998
      %v2007 = vmul.f32 %v1975, %v1999
      %v2008 = vmul.f32 %v1976, %v2000
      %v2009 = vmul.f32 %v1977, %v2001
      %v2010 = vmul.f32 %v1978, %v2002
      %v2011 = vmul.f32 %v1979, %v2003
      %v2012 = vmul.f32 %v1980, %v1996
      %v2013 = vmul.f32 %v1981, %v1997
      %v2014 = vmul.f32 %v1982, %v1998
      %v2015 = vmul.f32 %v1983, %v1999
      %v2016 = vmul.f32 %v1984, %v2000
      %v2017 = vmul.f32 %v1985, %v2001
      %v2018 = vmul.f32 %v1986, %v2002
      %v2019 = vmul.f32 %v1987, %v2003
      %v2020 = vld [vmem:[%s386] sm:$0xf]
      %v2021 = vld [vmem:[%s386 + $0x4] sm:$0xf]
      %v2022 = vld [vmem:[%s386 + $0x8] sm:$0xf]
      %v2023 = vld [vmem:[%s386 + $0xc] sm:$0xf]
      %v2024 = vld [vmem:[%s386 + $0x10] sm:$0xf]
      %v2025 = vld [vmem:[%s386 + $0x14] sm:$0xf]
      %v2026 = vld [vmem:[%s386 + $0x18] sm:$0xf]
      %v2027 = vld [vmem:[%s386 + $0x1c] sm:$0xf]
      %v2028 = vunpack.c.l.bf16 %v2020
      %v2029 = vunpack.c.l.bf16 %v2021
      %v2030 = vunpack.c.l.bf16 %v2022
      %v2031 = vunpack.c.l.bf16 %v2023
      %v2032 = vunpack.c.l.bf16 %v2024
      %v2033 = vunpack.c.l.bf16 %v2025
      %v2034 = vunpack.c.l.bf16 %v2026
      %v2035 = vunpack.c.l.bf16 %v2027
      %vm2036 = vcmp.ge.f32.partialorder %v2028, 0.0
      %vm2037 = vcmp.ge.f32.partialorder %v2029, 0.0
      %vm2038 = vcmp.ge.f32.partialorder %v2030, 0.0
      %vm2039 = vcmp.ge.f32.partialorder %v2031, 0.0
      %vm2040 = vcmp.ge.f32.partialorder %v2032, 0.0
      %vm2041 = vcmp.ge.f32.partialorder %v2033, 0.0
      %vm2042 = vcmp.ge.f32.partialorder %v2034, 0.0
      %vm2043 = vcmp.ge.f32.partialorder %v2035, 0.0
      %v2044 = vsel %vm2036, 0.01, -0.01
      %v2045 = vsel %vm2037, 0.01, -0.01
      %v2046 = vsel %vm2038, 0.01, -0.01
      %v2047 = vsel %vm2039, 0.01, -0.01
      %v2048 = vsel %vm2040, 0.01, -0.01
      %v2049 = vsel %vm2041, 0.01, -0.01
      %v2050 = vsel %vm2042, 0.01, -0.01
      %v2051 = vsel %vm2043, 0.01, -0.01
      %v2052 = vadd.f32 %v2028, %v2044
      %v2053 = vadd.f32 %v2029, %v2045
      %v2054 = vadd.f32 %v2030, %v2046
      %v2055 = vadd.f32 %v2031, %v2047
      %v2056 = vadd.f32 %v2032, %v2048
      %v2057 = vadd.f32 %v2033, %v2049
      %v2058 = vadd.f32 %v2034, %v2050
      %v2059 = vadd.f32 %v2035, %v2051
      %v2060 = vrcp.pop %v2052
      %v2061 = vrcp.pop %v2053
      %v2062 = vrcp.pop %v2054
      %v2063 = vrcp.pop %v2055
      %v2064 = vrcp.pop %v2056
      %v2065 = vrcp.pop %v2057
      %v2066 = vrcp.pop %v2058
      %v2067 = vrcp.pop %v2059
      %v2068 = vmul.f32 %v2004, %v2060
      %v2069 = vmul.f32 %v2005, %v2061
      %v2070 = vmul.f32 %v2006, %v2062
      %v2071 = vmul.f32 %v2007, %v2063
      %v2072 = vmul.f32 %v2008, %v2064
      %v2073 = vmul.f32 %v2009, %v2065
      %v2074 = vmul.f32 %v2010, %v2066
      %v2075 = vmul.f32 %v2011, %v2067
      %v2076 = vmul.f32 %v2012, %v2060
      %v2077 = vmul.f32 %v2013, %v2061
      %v2078 = vmul.f32 %v2014, %v2062
      %v2079 = vmul.f32 %v2015, %v2063
      %v2080 = vmul.f32 %v2016, %v2064
      %v2081 = vmul.f32 %v2017, %v2065
      %v2082 = vmul.f32 %v2018, %v2066
      %v2083 = vmul.f32 %v2019, %v2067
      %v2084 = vpack.c.bf16 %v2069, %v2068
      %v2085 = vpack.c.bf16 %v2071, %v2070
      %v2086 = vpack.c.bf16 %v2073, %v2072
      %v2087 = vpack.c.bf16 %v2075, %v2074
      %v2088 = vpack.c.bf16 %v2077, %v2076
      %v2089 = vpack.c.bf16 %v2079, %v2078
      %v2090 = vpack.c.bf16 %v2081, %v2080
      %v2091 = vpack.c.bf16 %v2083, %v2082
      %v2092 = vld [vmem:[%s5] sm:$0xf]
      %v2093 = vld [vmem:[%s5 + $0x4] sm:$0xf]
      %v2094 = vld [vmem:[%s5 + $0x8] sm:$0xf]
      %v2095 = vld [vmem:[%s5 + $0xc] sm:$0xf]
      %v2096 = vld [vmem:[%s5 + $0x10] sm:$0xf]
      %v2097 = vld [vmem:[%s5 + $0x14] sm:$0xf]
      %v2098 = vld [vmem:[%s5 + $0x18] sm:$0xf]
      %v2099 = vld [vmem:[%s5 + $0x1c] sm:$0xf]
      %v2100 = vld [vmem:[%s5 + $0x20] sm:$0xf]
      %v2101 = vld [vmem:[%s5 + $0x24] sm:$0xf]
      %v2102 = vld [vmem:[%s5 + $0x28] sm:$0xf]
      %v2103 = vld [vmem:[%s5 + $0x2c] sm:$0xf]
      %v2104 = vld [vmem:[%s5 + $0x30] sm:$0xf]
      %v2105 = vld [vmem:[%s5 + $0x34] sm:$0xf]
      %v2106 = vld [vmem:[%s5 + $0x38] sm:$0xf]
      %v2107 = vld [vmem:[%s5 + $0x3c] sm:$0xf]
      %v2124 = vunpack.c.l.b16 %v2092
      %v2125 = vunpack.c.l.b16 %v2093
      %v2126 = vunpack.c.l.b16 %v2094
      %v2127 = vunpack.c.l.b16 %v2095
      %v2128 = vunpack.c.l.b16 %v2096
      %v2129 = vunpack.c.l.b16 %v2097
      %v2130 = vunpack.c.l.b16 %v2098
      %v2131 = vunpack.c.l.b16 %v2099
      %v2132 = vunpack.c.l.b16 %v2100
      %v2133 = vunpack.c.l.b16 %v2101
      %v2134 = vunpack.c.l.b16 %v2102
      %v2135 = vunpack.c.l.b16 %v2103
      %v2136 = vunpack.c.l.b16 %v2104
      %v2137 = vunpack.c.l.b16 %v2105
      %v2138 = vunpack.c.l.b16 %v2106
      %v2139 = vunpack.c.l.b16 %v2107
      %v2140 = vpack.c.b16 %v2125, %v2124
      %v2141 = vpack.c.b16 %v2127, %v2126
      %v2142 = vpack.c.b16 %v2129, %v2128
      %v2143 = vpack.c.b16 %v2131, %v2130
      %v2144 = vpack.c.b16 %v2133, %v2132
      %v2145 = vpack.c.b16 %v2135, %v2134
      %v2146 = vpack.c.b16 %v2137, %v2136
      %v2147 = vpack.c.b16 %v2139, %v2138
      %2156 = vmatpush.bf16.msra.mxu0 %v2147
      %2157 = vmatpush.bf16.msra.mxu0 %v2146
      %2158 = vmatpush.bf16.msra.mxu0 %v2145
      %2159 = vmatpush.bf16.msra.mxu0 %v2144
      %2160 = vmatpush.bf16.msra.mxu0 %v2143
      %2161 = vmatpush.bf16.msra.mxu0 %v2142
      %2162 = vmatpush.bf16.msra.mxu0 %v2141
      %2163 = vmatpush.bf16.msra.mxu0 %v2140
      %2164 = vmatmul.bf16.gmra.mxu0 %v2084
      %v2165 = vpop.f32.mrf.mxu0
      %v2166 = vadd.f32 0.0, %v2165
      %v2167 = vpop.f32.mrf.mxu0
      %v2168 = vadd.f32 0.0, %v2167
      %2169 = vmatmul.bf16.gmra.mxu0 %v2085
      %v2170 = vpop.f32.mrf.mxu0
      %v2171 = vadd.f32 0.0, %v2170
      %v2172 = vpop.f32.mrf.mxu0
      %v2173 = vadd.f32 0.0, %v2172
      %2174 = vmatmul.bf16.gmra.mxu0 %v2086
      %v2175 = vpop.f32.mrf.mxu0
      %v2176 = vadd.f32 0.0, %v2175
      %v2177 = vpop.f32.mrf.mxu0
      %v2178 = vadd.f32 0.0, %v2177
      %2179 = vmatmul.bf16.gmra.mxu0 %v2087
      %v2180 = vpop.f32.mrf.mxu0
      %v2181 = vadd.f32 0.0, %v2180
      %v2182 = vpop.f32.mrf.mxu0
      %v2183 = vadd.f32 0.0, %v2182
      %2184 = vmatmul.bf16.gmra.mxu0 %v2088
      %v2185 = vpop.f32.mrf.mxu0
      %v2186 = vadd.f32 0.0, %v2185
      %v2187 = vpop.f32.mrf.mxu0
      %v2188 = vadd.f32 0.0, %v2187
      %2189 = vmatmul.bf16.gmra.mxu0 %v2089
      %v2190 = vpop.f32.mrf.mxu0
      %v2191 = vadd.f32 0.0, %v2190
      %v2192 = vpop.f32.mrf.mxu0
      %v2193 = vadd.f32 0.0, %v2192
      %2194 = vmatmul.bf16.gmra.mxu0 %v2090
      %v2195 = vpop.f32.mrf.mxu0
      %v2196 = vadd.f32 0.0, %v2195
      %v2197 = vpop.f32.mrf.mxu0
      %v2198 = vadd.f32 0.0, %v2197
      %2199 = vmatmul.bf16.gmra.mxu0 %v2091
      %v2200 = vpop.f32.mrf.mxu0
      %v2201 = vadd.f32 0.0, %v2200
      %v2202 = vpop.f32.mrf.mxu0
      %v2203 = vadd.f32 0.0, %v2202
      %2204 = vdwg.mxu0
      %v2205 = vld [vmem:[%s391] sm:$0xf]
      %v2206 = vld [vmem:[%s391 + $0x4] sm:$0xf]
      %v2207 = vld [vmem:[%s391 + $0x8] sm:$0xf]
      %v2208 = vld [vmem:[%s391 + $0xc] sm:$0xf]
      %v2209 = vld [vmem:[%s391 + $0x10] sm:$0xf]
      %v2210 = vld [vmem:[%s391 + $0x14] sm:$0xf]
      %v2211 = vld [vmem:[%s391 + $0x18] sm:$0xf]
      %v2212 = vld [vmem:[%s391 + $0x1c] sm:$0xf]
      %v2213 = vunpack.c.l.bf16 %v2205
      %v2214 = vunpack.c.l.bf16 %v2206
      %v2215 = vunpack.c.l.bf16 %v2207
      %v2216 = vunpack.c.l.bf16 %v2208
      %v2217 = vunpack.c.l.bf16 %v2209
      %v2218 = vunpack.c.l.bf16 %v2210
      %v2219 = vunpack.c.l.bf16 %v2211
      %v2220 = vunpack.c.l.bf16 %v2212
      %v2221 = vmul.f32 %v2166, %v2213
      %v2222 = vmul.f32 %v2168, %v2214
      %v2223 = vmul.f32 %v2171, %v2215
      %v2224 = vmul.f32 %v2173, %v2216
      %v2225 = vmul.f32 %v2176, %v2217
      %v2226 = vmul.f32 %v2178, %v2218
      %v2227 = vmul.f32 %v2181, %v2219
      %v2228 = vmul.f32 %v2183, %v2220
      %v2229 = vmul.f32 %v2186, %v2213
      %v2230 = vmul.f32 %v2188, %v2214
      %v2231 = vmul.f32 %v2191, %v2215
      %v2232 = vmul.f32 %v2193, %v2216
      %v2233 = vmul.f32 %v2196, %v2217
      %v2234 = vmul.f32 %v2198, %v2218
      %v2235 = vmul.f32 %v2201, %v2219
      %v2236 = vmul.f32 %v2203, %v2220
      %2237 = vst [vmem:[%s401] sm:$0xff] %v2221
      %2238 = vst [vmem:[%s401 + $0x8] sm:$0xff] %v2222
      %2239 = vst [vmem:[%s401 + $0x10] sm:$0xff] %v2223
      %2240 = vst [vmem:[%s401 + $0x18] sm:$0xff] %v2224
      %2241 = vst [vmem:[%s401 + $0x20] sm:$0xff] %v2225
      %2242 = vst [vmem:[%s401 + $0x28] sm:$0xff] %v2226
      %2243 = vst [vmem:[%s401 + $0x30] sm:$0xff] %v2227
      %2244 = vst [vmem:[%s401 + $0x38] sm:$0xff] %v2228
      %2245 = vst [vmem:[%s401 + $0x40] sm:$0xff] %v2229
      %2246 = vst [vmem:[%s401 + $0x48] sm:$0xff] %v2230
      %2247 = vst [vmem:[%s401 + $0x50] sm:$0xff] %v2231
      %2248 = vst [vmem:[%s401 + $0x58] sm:$0xff] %v2232
      %2249 = vst [vmem:[%s401 + $0x60] sm:$0xff] %v2233
      %2250 = vst [vmem:[%s401 + $0x68] sm:$0xff] %v2234
      %2251 = vst [vmem:[%s401 + $0x70] sm:$0xff] %v2235
      %2252 = vst [vmem:[%s401 + $0x78] sm:$0xff] %v2236
      %s2253 = smul.u32 2, %s23
      %p2254 = scmp.lt.s32.totalorder %s22, 1
      %s2255 = scalar_select %p2254, %s22, 1
      %p2256 = scmp.lt.s32.totalorder %s2253, 1
      %s2257 = scalar_select %p2256, %s2253, 1
      %s2258 = smul.addr %s2257, 8
      %s2259 = smul.addr %s2255, 16
      %s2260 = sadd.s32 %s2258, %s2259
      %s2261 = smul.addr %s2260, 8
      %s2262 = scalar_lea.vmem %s7, %s2261
      // Predicated region
      $region49: #{lrp_dense_layer.1} parent=47 // pred_check
        %p2263 = pneg %p224
      $region50: #{lrp_dense_layer.1} parent=47 // pred_check_branch
        %2265 = sbr.rel (%p2263) target = $region52
      $region51: #{lrp_dense_layer.1} parent=47 // pred_region
        %s2266 = smul.u32 2, %s23
      $region52: #{lrp_dense_layer.1} parent=47 // pred_fallthru
        _
    $region48: #{lrp_dense_layer.1} parent=5 // pred_fallthru
      _
    %p2267 = scmp.le.s32.totalorder 2, %s13
    // Predicated region
    $region53: #{lrp_dense_layer.1} parent=5 // pred_check
      %p2268 = pneg %p2267
    $region54: #{lrp_dense_layer.1} parent=5 // pred_check_branch
      %2270 = sbr.rel (%p2268) target = $region56
    $region55: #{lrp_dense_layer.1} parent=5 // pred_region
      %s2271 = ssub.s32 %s13, 2
      // Predicated region
      $region57: #{lrp_dense_layer.1} parent=55 // pred_check
        %p2272 = pneg %p230
      $region58: #{lrp_dense_layer.1} parent=55 // pred_check_branch
        %2274 = sbr.rel (%p2272) target = $region60
      $region59: #{lrp_dense_layer.1} parent=55 // pred_region
        %s2275 = smul.u32 2, %s25
        %p2276 = scmp.lt.s32.totalorder %s24, 1
        %s2277 = scalar_select %p2276, %s24, 1
        %p2278 = scmp.lt.s32.totalorder %s2275, 1
        %s2279 = scalar_select %p2278, %s2275, 1
        %s2280 = smul.addr %s2279, 8
        %s2281 = smul.addr %s2277, 16
        %s2282 = sadd.s32 %s2280, %s2281
        %s2283 = smul.addr %s2282, 8
        %s2284 = scalar_lea.vmem %s7, %s2283
      $region60: #{lrp_dense_layer.1} parent=55 // pred_fallthru
        _
    $region56: #{lrp_dense_layer.1} parent=5 // pred_fallthru
      _
  $region6: #{lrp_dense_layer.1} parent=0 // loop_footer
    %s17 = sadd.s32 1, %s13
  $region7: #{lrp_dense_layer.1} parent=0 // loop_footer_branch
    %12 = sbr.rel target = $region3
  $region8: #{lrp_dense_layer.1} parent=0 // loop_exit
    _

</llo_original>
